<compile_context>
chip_gen: v7x
topology: tpu7x:2x2x1
jax: 0.10.0
libtpu: 0.0.40
codegen_flags: <defaults>
</compile_context>

<pallas_src>
import jax
import jax.numpy as jnp
import numpy as np
from jax.experimental import pallas as pl
from jax.experimental.pallas import tpu as pltpu

H1 = 512        # grade_predictor hidden 1
H2 = 256        # grade_predictor hidden 2
HO = 256        # ordinal_encoder hidden
OUT_PAD = 128   # lane-dense padded output width (holds logits | ordinal | 0s)
BN_EPS = 1e-5


def _round_up(n, m):
    return (n + m - 1) // m * m


def _cdiv(a, b):
    return (a + b - 1) // b


# ---------------------------------------------------------------------------
# Kernel
# ---------------------------------------------------------------------------
def grade_head_kernel(x_ref, w_in_ref, b_in_ref, w2_ref, b2_ref,
                      w_out_h_ref, w_out_o_ref, b_out_ref, out_ref):
    x = x_ref[...]                                            # (tile_b, F) bf16

    # Fused first layer for both branches (BN already folded into w_in/b_in):
    #   grade branch  -> columns [0, 512),   ordinal branch -> columns [512, 768)
    # bf16 MXU matmul with f32 accumulation; bias + GELU in f32.
    y = jnp.dot(x, w_in_ref[...], preferred_element_type=jnp.float32) + b_in_ref[...]
    y = jax.nn.gelu(y, approximate=True)                      # tanh-GELU -> EUP slot
    h = y[:, :H1].astype(jnp.bfloat16)                        # lane-aligned slices
    o = y[:, H1:].astype(jnp.bfloat16)

    # Second grade layer (BN folded into w2/b2) + GELU.  Dropout == identity (eval).
    h = jnp.dot(h, w2_ref[...], preferred_element_type=jnp.float32) + b2_ref[...]
    h = jax.nn.gelu(h, approximate=True).astype(jnp.bfloat16)

    # Final projections as two accumulating K=256 dots (no lane-concat copy),
    # producing one lane-dense (tile_b, 128) slab: [logits | ordinal | zero-pad].
    acc = jnp.dot(h, w_out_h_ref[...], preferred_element_type=jnp.float32)
    acc = acc + jnp.dot(o, w_out_o_ref[...], preferred_element_type=jnp.float32)
    out_ref[...] = acc + b_out_ref[...]


# ---------------------------------------------------------------------------
# Parameter packing (one-time constant folding, not per call)
# ---------------------------------------------------------------------------
def pack_params(params, num_grades):
    assert 2 * num_grades - 1 <= OUT_PAD, (
        f"num_grades={num_grades} needs 2*num_grades-1 <= OUT_PAD={OUT_PAD}")

    # BatchNorm1d eval-mode fold: y = (h - mean)/sqrt(var+eps)*gamma + beta
    #   scale s = gamma / sqrt(var + eps),  shift t = beta - mean * s
    s1 = params["g1"] / jnp.sqrt(params["v1"] + BN_EPS)
    t1 = params["be1"] - params["m1"] * s1
    s2 = params["g2"] / jnp.sqrt(params["v2"] + BN_EPS)
    t2 = params["be2"] - params["m2"] * s2

    w1 = params["w1"] * s1                                    # (F, 512)
    b1 = params["b1"] * s1 + t1                               # (1, 512)
    w2 = params["w2"] * s2                                    # (512, 256)
    b2 = params["b2"] * s2 + t2                               # (1, 256)

    # Fuse the two first-layer matmuls that share the same LHS x.
    w_in = jnp.concatenate([w1, params["w4"]], axis=1).astype(jnp.bfloat16)  # (F, 768)
    b_in = jnp.concatenate([b1, params["b4"]], axis=1).astype(jnp.float32)   # (1, 768)

    # Zero-padded final weights, split per branch -> two accumulating dots.
    ng = num_grades
    w_out_h = jnp.zeros((H2, OUT_PAD), jnp.float32)
    w_out_h = w_out_h.at[:, :ng].set(params["w3"]).astype(jnp.bfloat16)
    w_out_o = jnp.zeros((HO, OUT_PAD), jnp.float32)
    w_out_o = w_out_o.at[:, ng:2 * ng - 1].set(params["w5"]).astype(jnp.bfloat16)
    b_out = jnp.zeros((1, OUT_PAD), jnp.float32)
    b_out = b_out.at[:, :ng].set(params["b3"][0])
    b_out = b_out.at[:, ng:2 * ng - 1].set(params["b5"][0])

    return (w_in, b_in, w2.astype(jnp.bfloat16), b2.astype(jnp.float32),
            w_out_h, w_out_o, b_out)


# ---------------------------------------------------------------------------
# Tiling / pallas_call wrapper
# ---------------------------------------------------------------------------
def _choose_tile_b(B, max_tile=512):
    """Batch tile: multiple of 16 (bf16 sublane packing), >=2 grid steps when
    the batch permits (v7x megacore), padding overshoot kept <= ~25%."""
    b16 = _round_up(B, 16)
    cap = b16 if b16 < 32 else min(max_tile, _round_up(_cdiv(b16, 2), 16))
    tile_b = max(16, cap)
    while tile_b > 16 and (_round_up(b16, tile_b) - B) * 4 > B:
        tile_b -= 16
    b_pad = _round_up(b16, tile_b)
    return tile_b, b_pad


def _pallas_forward(x_pad, weights, *, tile_b, single_buffer_weights):
    b_pad, F = x_pad.shape
    resident = lambda i: (0, 0)    # weights: same full block every grid step

    def resident_spec(a):
        if single_buffer_weights:
            # index_map never changes -> no need for double buffering (VMEM win
            # on v7x with production-size F).
            return pl.BlockSpec(a.shape, resident, pipeline_mode=pl.Buffered(1))
        return pl.BlockSpec(a.shape, resident)

    grid = (b_pad // tile_b,)

    flops = 2 * b_pad * (F * (H1 + HO) + H1 * H2 + (H2 + HO) * OUT_PAD)
    transcendentals = b_pad * (H1 + HO + H2)
    weight_bytes = sum(int(np.prod(a.shape)) * a.dtype.itemsize for a in weights)
    bytes_accessed = 2 * b_pad * F + 4 * b_pad * OUT_PAD + weight_bytes

    # Explicit scoped-VMEM budget (v5e default is only 16 MiB).
    io_bytes = 2 * (tile_b * F * 2 + tile_b * OUT_PAD * 4)        # dbl-buffered x/out
    interm_bytes = tile_b * ((H1 + HO) * 6 + H2 * 6 + 2 * OUT_PAD * 4)
    vmem_est = (weight_bytes * (1 if single_buffer_weights else 2)
                + io_bytes + interm_bytes)
    vmem_limit = int(min(64 << 20, max(32 << 20, 2 * vmem_est)))

    return pl.pallas_call(
        grade_head_kernel,
        out_shape=jax.ShapeDtypeStruct((b_pad, OUT_PAD), jnp.float32),
        grid_spec=pltpu.PrefetchScalarGridSpec(
            num_scalar_prefetch=0,
            grid=grid,
            in_specs=[pl.BlockSpec((tile_b, F), lambda i: (i, 0))]   # x: batch-tiled
                     + [resident_spec(a) for a in weights],
            out_specs=pl.BlockSpec((tile_b, OUT_PAD), lambda i: (i, 0)),
        ),
        compiler_params=pltpu.CompilerParams(
            dimension_semantics=("parallel",),
            vmem_limit_bytes=vmem_limit),
        cost_estimate=pl.CostEstimate(
            flops=flops,
            transcendentals=transcendentals,
            bytes_accessed=bytes_accessed),
    )(x_pad, *weights)


def grade_consistency_head(x, params, num_grades=5, max_tile_b=512):
    """Returns (logits (B, num_grades), ordinal_thresholds (B, num_grades-1))."""
    B, F = x.shape
    weights = pack_params(params, num_grades)

    tile_b, b_pad = _choose_tile_b(B, max_tile_b)
    if b_pad != B:
        x = jnp.pad(x, ((0, b_pad - B), (0, 0)))
    x = x.astype(jnp.bfloat16)

    try:
        out = jax.block_until_ready(
            _pallas_forward(x, weights, tile_b=tile_b, single_buffer_weights=True))
    except Exception:
        # pipeline_mode=pl.Buffered not supported by this jax/libtpu build;
        # fall back to default double-buffered resident weight blocks.
        out = _pallas_forward(x, weights, tile_b=tile_b, single_buffer_weights=False)

    logits = out[:B, :num_grades]
    ordinal = out[:B, num_grades:2 * num_grades - 1]
    return logits, ordinal


# ---------------------------------------------------------------------------
# Parameters (PyTorch-like init) and pure-JAX reference for validation
# ---------------------------------------------------------------------------
def init_params(key, feature_dim, num_grades=5):
    """Deterministic PyTorch-like init + non-trivial BatchNorm running stats
    so the eval-mode BN fold is genuinely exercised."""
    def linear(key, fan_in, fan_out):
        kw, kb = jax.random.split(key)
        bound = 1.0 / np.sqrt(fan_in)
        w = jax.random.uniform(kw, (fan_in, fan_out), jnp.float32, -bound, bound)
        b = jax.random.uniform(kb, (1, fan_out), jnp.float32, -bound, bound)
        return w, b

    def batchnorm(key, n):
        kg, kb, km, kv = jax.random.split(key, 4)
        gamma = jax.random.uniform(kg, (1, n), jnp.float32, 0.5, 1.5)
        beta = jax.random.uniform(kb, (1, n), jnp.float32, -0.2, 0.2)
        mean = jax.random.normal(km, (1, n), jnp.float32) * 0.1
        var = jax.random.uniform(kv, (1, n), jnp.float32, 0.5, 1.5)
        return gamma, beta, mean, var

    keys = jax.random.split(key, 7)
    w1, b1 = linear(keys[0], feature_dim, H1)
    g1, be1, m1, v1 = batchnorm(keys[1], H1)
    w2, b2 = linear(keys[2], H1, H2)
    g2, be2, m2, v2 = batchnorm(keys[3], H2)
    w3, b3 = linear(keys[4], H2, num_grades)
    w4, b4 = linear(keys[5], feature_dim, HO)
    w5, b5 = linear(keys[6], HO, num_grades - 1)

    return dict(w1=w1, b1=b1, g1=g1, be1=be1, m1=m1, v1=v1,
                w2=w2, b2=b2, g2=g2, be2=be2, m2=m2, v2=v2,
                w3=w3, b3=b3, w4=w4, b4=b4, w5=w5, b5=b5)


def reference_forward(x, params):
    """Pure-JAX f32 reference matching the PyTorch module (eval mode)."""
    def bn(h, g, be, m, v):
        return (h - m) / jnp.sqrt(v + BN_EPS) * g + be

    h = x @ params["w1"] + params["b1"]
    h = bn(h, params["g1"], params["be1"], params["m1"], params["v1"])
    h = jax.nn.gelu(h, approximate=False)
    h = h @ params["w2"] + params["b2"]
    h = bn(h, params["g2"], params["be2"], params["m2"], params["v2"])
    h = jax.nn.gelu(h, approximate=False)
    logits = h @ params["w3"] + params["b3"]
    o = jax.nn.gelu(x @ params["w4"] + params["b4"], approximate=False)
    ordinal = o @ params["w5"] + params["b5"]
    return logits, ordinal


if __name__ == "__main__":
    B, FEATURE_DIM, NUM_GRADES = 8, 32, 5

    key = jax.random.PRNGKey(0)
    kx, kp = jax.random.split(key)
    x = jax.random.normal(kx, (B, FEATURE_DIM), dtype=jnp.float32)
    params = init_params(kp, FEATURE_DIM, NUM_GRADES)

    logits, ordinal = grade_consistency_head(x, params, NUM_GRADES)
    jax.block_until_ready((logits, ordinal))

    assert logits.shape == (B, NUM_GRADES)
    assert ordinal.shape == (B, NUM_GRADES - 1)

    # bf16 matmuls + tanh-GELU vs. the f32 exact-erf reference: 1e-2 tolerance.
    ref_logits, ref_ordinal = reference_forward(x, params)
    np.testing.assert_allclose(np.asarray(logits), np.asarray(ref_logits),
                               rtol=1e-2, atol=1e-2)
    np.testing.assert_allclose(np.asarray(ordinal), np.asarray(ref_ordinal),
                               rtol=1e-2, atol=1e-2)

    print("KERNEL_OK")
</pallas_src>

<mosaic_0001>
module attributes {stable_mosaic.version = 11 : i64} {
  func.func @grade_head_kernel(%arg0: i32, %arg1: memref<16x32xbf16, #tpu.memory_space<vmem>>, %arg2: memref<32x768xbf16, #tpu.memory_space<vmem>>, %arg3: memref<1x768xf32, #tpu.memory_space<vmem>>, %arg4: memref<512x256xbf16, #tpu.memory_space<vmem>>, %arg5: memref<1x256xf32, #tpu.memory_space<vmem>>, %arg6: memref<256x128xbf16, #tpu.memory_space<vmem>>, %arg7: memref<256x128xbf16, #tpu.memory_space<vmem>>, %arg8: memref<1x128xf32, #tpu.memory_space<vmem>>, %arg9: memref<16x128xf32, #tpu.memory_space<vmem>>) attributes {dimension_semantics = [#tpu.dimension_semantics<parallel>], iteration_bounds = array<i64: 1>, scalar_prefetch = 0 : i64, scratch_operands = 0 : i64, tpu.core_type = #tpu.core_type<tc>, window_params = [{transform_indices = @transform_0, window_bounds = array<i64: 16, 32>}, {pipeline_mode = #tpu.pipeline_mode<synchronous>, transform_indices = @transform_1, window_bounds = array<i64: 32, 768>}, {pipeline_mode = #tpu.pipeline_mode<synchronous>, transform_indices = @transform_2, window_bounds = array<i64: 1, 768>}, {pipeline_mode = #tpu.pipeline_mode<synchronous>, transform_indices = @transform_3, window_bounds = array<i64: 512, 256>}, {pipeline_mode = #tpu.pipeline_mode<synchronous>, transform_indices = @transform_4, window_bounds = array<i64: 1, 256>}, {pipeline_mode = #tpu.pipeline_mode<synchronous>, transform_indices = @transform_5, window_bounds = array<i64: 256, 128>}, {pipeline_mode = #tpu.pipeline_mode<synchronous>, transform_indices = @transform_6, window_bounds = array<i64: 256, 128>}, {pipeline_mode = #tpu.pipeline_mode<synchronous>, transform_indices = @transform_7, window_bounds = array<i64: 1, 128>}, {transform_indices = @transform_8, window_bounds = array<i64: 16, 128>}]} {
    %c0 = arith.constant 0 : index
    %c0_0 = arith.constant 0 : index
    %0 = vector.load %arg1[%c0, %c0_0] : memref<16x32xbf16, #tpu.memory_space<vmem>>, vector<16x32xbf16>
    %c0_1 = arith.constant 0 : index
    %c0_2 = arith.constant 0 : index
    %1 = vector.load %arg2[%c0_1, %c0_2] : memref<32x768xbf16, #tpu.memory_space<vmem>>, vector<32x768xbf16>
    %cst = arith.constant dense<0.000000e+00> : vector<16x768xf32>
    %2 = tpu.matmul %0, %1, %cst {dimension_numbers = #tpu.dot_dimension_numbers<[1], [0], [0], [1], [0, 0, 1, 1], [], []>} : vector<16x32xbf16>, vector<32x768xbf16>, vector<16x768xf32> -> vector<16x768xf32>
    %c0_3 = arith.constant 0 : index
    %c0_4 = arith.constant 0 : index
    %3 = vector.load %arg3[%c0_3, %c0_4] : memref<1x768xf32, #tpu.memory_space<vmem>>, vector<1x768xf32>
    %4 = vector.broadcast %3 : vector<1x768xf32> to vector<16x768xf32>
    %5 = arith.addf %2, %4 : vector<16x768xf32>
    %6 = arith.mulf %5, %5 : vector<16x768xf32>
    %7 = arith.mulf %5, %6 : vector<16x768xf32>
    %cst_5 = arith.constant 4.471500e-02 : f32
    %8 = vector.broadcast %cst_5 : f32 to vector<16x768xf32>
    %9 = arith.mulf %8, %7 : vector<16x768xf32>
    %10 = arith.addf %5, %9 : vector<16x768xf32>
    %cst_6 = arith.constant 0.797884583 : f32
    %11 = vector.broadcast %cst_6 : f32 to vector<16x768xf32>
    %12 = arith.mulf %11, %10 : vector<16x768xf32>
    %13 = math.tanh %12 : vector<16x768xf32>
    %cst_7 = arith.constant 1.000000e+00 : f32
    %14 = vector.broadcast %cst_7 : f32 to vector<16x768xf32>
    %15 = arith.addf %14, %13 : vector<16x768xf32>
    %cst_8 = arith.constant 5.000000e-01 : f32
    %16 = vector.broadcast %cst_8 : f32 to vector<16x768xf32>
    %17 = arith.mulf %16, %15 : vector<16x768xf32>
    %18 = arith.mulf %5, %17 : vector<16x768xf32>
    %19 = vector.extract_strided_slice %18 {offsets = [0, 0], sizes = [16, 512], strides = [1, 1]} : vector<16x768xf32> to vector<16x512xf32>
    %20 = arith.truncf %19 : vector<16x512xf32> to vector<16x512xbf16>
    %21 = vector.extract_strided_slice %18 {offsets = [0, 512], sizes = [16, 256], strides = [1, 1]} : vector<16x768xf32> to vector<16x256xf32>
    %22 = arith.truncf %21 : vector<16x256xf32> to vector<16x256xbf16>
    %c0_9 = arith.constant 0 : index
    %c0_10 = arith.constant 0 : index
    %23 = vector.load %arg4[%c0_9, %c0_10] : memref<512x256xbf16, #tpu.memory_space<vmem>>, vector<512x256xbf16>
    %cst_11 = arith.constant dense<0.000000e+00> : vector<16x256xf32>
    %24 = tpu.matmul %20, %23, %cst_11 {dimension_numbers = #tpu.dot_dimension_numbers<[1], [0], [0], [1], [0, 0, 1, 1], [], []>} : vector<16x512xbf16>, vector<512x256xbf16>, vector<16x256xf32> -> vector<16x256xf32>
    %c0_12 = arith.constant 0 : index
    %c0_13 = arith.constant 0 : index
    %25 = vector.load %arg5[%c0_12, %c0_13] : memref<1x256xf32, #tpu.memory_space<vmem>>, vector<1x256xf32>
    %26 = vector.broadcast %25 : vector<1x256xf32> to vector<16x256xf32>
    %27 = arith.addf %24, %26 : vector<16x256xf32>
    %28 = arith.mulf %27, %27 : vector<16x256xf32>
    %29 = arith.mulf %27, %28 : vector<16x256xf32>
    %cst_14 = arith.constant 4.471500e-02 : f32
    %30 = vector.broadcast %cst_14 : f32 to vector<16x256xf32>
    %31 = arith.mulf %30, %29 : vector<16x256xf32>
    %32 = arith.addf %27, %31 : vector<16x256xf32>
    %cst_15 = arith.constant 0.797884583 : f32
    %33 = vector.broadcast %cst_15 : f32 to vector<16x256xf32>
    %34 = arith.mulf %33, %32 : vector<16x256xf32>
    %35 = math.tanh %34 : vector<16x256xf32>
    %cst_16 = arith.constant 1.000000e+00 : f32
    %36 = vector.broadcast %cst_16 : f32 to vector<16x256xf32>
    %37 = arith.addf %36, %35 : vector<16x256xf32>
    %cst_17 = arith.constant 5.000000e-01 : f32
    %38 = vector.broadcast %cst_17 : f32 to vector<16x256xf32>
    %39 = arith.mulf %38, %37 : vector<16x256xf32>
    %40 = arith.mulf %27, %39 : vector<16x256xf32>
    %41 = arith.truncf %40 : vector<16x256xf32> to vector<16x256xbf16>
    %c0_18 = arith.constant 0 : index
    %c0_19 = arith.constant 0 : index
    %42 = vector.load %arg6[%c0_18, %c0_19] : memref<256x128xbf16, #tpu.memory_space<vmem>>, vector<256x128xbf16>
    %cst_20 = arith.constant dense<0.000000e+00> : vector<16x128xf32>
    %43 = tpu.matmul %41, %42, %cst_20 {dimension_numbers = #tpu.dot_dimension_numbers<[1], [0], [0], [1], [0, 0, 1, 1], [], []>} : vector<16x256xbf16>, vector<256x128xbf16>, vector<16x128xf32> -> vector<16x128xf32>
    %c0_21 = arith.constant 0 : index
    %c0_22 = arith.constant 0 : index
    %44 = vector.load %arg7[%c0_21, %c0_22] : memref<256x128xbf16, #tpu.memory_space<vmem>>, vector<256x128xbf16>
    %cst_23 = arith.constant dense<0.000000e+00> : vector<16x128xf32>
    %45 = tpu.matmul %22, %44, %cst_23 {dimension_numbers = #tpu.dot_dimension_numbers<[1], [0], [0], [1], [0, 0, 1, 1], [], []>} : vector<16x256xbf16>, vector<256x128xbf16>, vector<16x128xf32> -> vector<16x128xf32>
    %46 = arith.addf %43, %45 : vector<16x128xf32>
    %c0_24 = arith.constant 0 : index
    %c0_25 = arith.constant 0 : index
    %47 = vector.load %arg8[%c0_24, %c0_25] : memref<1x128xf32, #tpu.memory_space<vmem>>, vector<1x128xf32>
    %48 = vector.broadcast %47 : vector<1x128xf32> to vector<16x128xf32>
    %49 = arith.addf %46, %48 : vector<16x128xf32>
    %c0_26 = arith.constant 0 : index
    %c0_27 = arith.constant 0 : index
    %50 = vector.load %arg9[%c0_26, %c0_27] : memref<16x128xf32, #tpu.memory_space<vmem>>, vector<16x128xf32>
    tpu.vector_store %arg9[%c0_26, %c0_27], %49 {strides = array<i32>} : memref<16x128xf32, #tpu.memory_space<vmem>>, vector<16x128xf32>,
    return
  }
  func.func @transform_0(%arg0: i32) -> (i32, i32) {
    %c0_i32 = arith.constant 0 : i32
    %c0_i32_0 = arith.constant 0 : i32
    return %arg0, %c0_i32 : i32, i32
  }
  func.func @transform_1(%arg0: i32) -> (i32, i32) {
    %c0_i32 = arith.constant 0 : i32
    %c0_i32_0 = arith.constant 0 : i32
    %c0_i32_1 = arith.constant 0 : i32
    return %c0_i32, %c0_i32_0 : i32, i32
  }
  func.func @transform_2(%arg0: i32) -> (i32, i32) {
    %c0_i32 = arith.constant 0 : i32
    %c0_i32_0 = arith.constant 0 : i32
    %c0_i32_1 = arith.constant 0 : i32
    return %c0_i32, %c0_i32_0 : i32, i32
  }
  func.func @transform_3(%arg0: i32) -> (i32, i32) {
    %c0_i32 = arith.constant 0 : i32
    %c0_i32_0 = arith.constant 0 : i32
    %c0_i32_1 = arith.constant 0 : i32
    return %c0_i32, %c0_i32_0 : i32, i32
  }
  func.func @transform_4(%arg0: i32) -> (i32, i32) {
    %c0_i32 = arith.constant 0 : i32
    %c0_i32_0 = arith.constant 0 : i32
    %c0_i32_1 = arith.constant 0 : i32
    return %c0_i32, %c0_i32_0 : i32, i32
  }
  func.func @transform_5(%arg0: i32) -> (i32, i32) {
    %c0_i32 = arith.constant 0 : i32
    %c0_i32_0 = arith.constant 0 : i32
    %c0_i32_1 = arith.constant 0 : i32
    return %c0_i32, %c0_i32_0 : i32, i32
  }
  func.func @transform_6(%arg0: i32) -> (i32, i32) {
    %c0_i32 = arith.constant 0 : i32
    %c0_i32_0 = arith.constant 0 : i32
    %c0_i32_1 = arith.constant 0 : i32
    return %c0_i32, %c0_i32_0 : i32, i32
  }
  func.func @transform_7(%arg0: i32) -> (i32, i32) {
    %c0_i32 = arith.constant 0 : i32
    %c0_i32_0 = arith.constant 0 : i32
    %c0_i32_1 = arith.constant 0 : i32
    return %c0_i32, %c0_i32_0 : i32, i32
  }
  func.func @transform_8(%arg0: i32) -> (i32, i32) {
    %c0_i32 = arith.constant 0 : i32
    %c0_i32_0 = arith.constant 0 : i32
    return %arg0, %c0_i32 : i32, i32
  }
}

module attributes {stable_mosaic.version = 11 : i64} {
  func.func @grade_head_kernel(%arg0: i32, %arg1: memref<16x32xbf16, #tpu.memory_space<vmem>>, %arg2: memref<32x768xbf16, #tpu.memory_space<vmem>>, %arg3: memref<1x768xf32, #tpu.memory_space<vmem>>, %arg4: memref<512x256xbf16, #tpu.memory_space<vmem>>, %arg5: memref<1x256xf32, #tpu.memory_space<vmem>>, %arg6: memref<256x128xbf16, #tpu.memory_space<vmem>>, %arg7: memref<256x128xbf16, #tpu.memory_space<vmem>>, %arg8: memref<1x128xf32, #tpu.memory_space<vmem>>, %arg9: memref<16x128xf32, #tpu.memory_space<vmem>>) attributes {dimension_semantics = [#tpu.dimension_semantics<parallel>], iteration_bounds = array<i64: 1>, scalar_prefetch = 0 : i64, scratch_operands = 0 : i64, tpu.core_type = #tpu.core_type<tc>, window_params = [{transform_indices = @transform_0, window_bounds = array<i64: 16, 32>}, {pipeline_mode = #tpu.pipeline_mode<synchronous>, transform_indices = @transform_1, window_bounds = array<i64: 32, 768>}, {pipeline_mode = #tpu.pipeline_mode<synchronous>, transform_indices = @transform_2, window_bounds = array<i64: 1, 768>}, {pipeline_mode = #tpu.pipeline_mode<synchronous>, transform_indices = @transform_3, window_bounds = array<i64: 512, 256>}, {pipeline_mode = #tpu.pipeline_mode<synchronous>, transform_indices = @transform_4, window_bounds = array<i64: 1, 256>}, {pipeline_mode = #tpu.pipeline_mode<synchronous>, transform_indices = @transform_5, window_bounds = array<i64: 256, 128>}, {pipeline_mode = #tpu.pipeline_mode<synchronous>, transform_indices = @transform_6, window_bounds = array<i64: 256, 128>}, {pipeline_mode = #tpu.pipeline_mode<synchronous>, transform_indices = @transform_7, window_bounds = array<i64: 1, 128>}, {transform_indices = @transform_8, window_bounds = array<i64: 16, 128>}]} {
    %c0 = arith.constant 0 : index
    %c0_0 = arith.constant 0 : index
    %0 = vector.load %arg1[%c0, %c0_0] : memref<16x32xbf16, #tpu.memory_space<vmem>>, vector<16x32xbf16>
    %c0_1 = arith.constant 0 : index
    %c0_2 = arith.constant 0 : index
    %1 = vector.load %arg2[%c0_1, %c0_2] : memref<32x768xbf16, #tpu.memory_space<vmem>>, vector<32x768xbf16>
    %cst = arith.constant dense<0.000000e+00> : vector<16x768xf32>
    %2 = tpu.matmul %0, %1, %cst {dimension_numbers = #tpu.dot_dimension_numbers<[1], [0], [0], [1], [0, 0, 1, 1], [], []>} : vector<16x32xbf16>, vector<32x768xbf16>, vector<16x768xf32> -> vector<16x768xf32>
    %c0_3 = arith.constant 0 : index
    %c0_4 = arith.constant 0 : index
    %3 = vector.load %arg3[%c0_3, %c0_4] : memref<1x768xf32, #tpu.memory_space<vmem>>, vector<1x768xf32>
    %4 = vector.broadcast %3 : vector<1x768xf32> to vector<16x768xf32>
    %5 = arith.addf %2, %4 : vector<16x768xf32>
    %6 = arith.mulf %5, %5 : vector<16x768xf32>
    %7 = arith.mulf %5, %6 : vector<16x768xf32>
    %cst_5 = arith.constant 4.471500e-02 : f32
    %8 = vector.broadcast %cst_5 : f32 to vector<16x768xf32>
    %9 = arith.mulf %8, %7 : vector<16x768xf32>
    %10 = arith.addf %5, %9 : vector<16x768xf32>
    %cst_6 = arith.constant 0.797884583 : f32
    %11 = vector.broadcast %cst_6 : f32 to vector<16x768xf32>
    %12 = arith.mulf %11, %10 : vector<16x768xf32>
    %13 = math.tanh %12 : vector<16x768xf32>
    %cst_7 = arith.constant 1.000000e+00 : f32
    %14 = vector.broadcast %cst_7 : f32 to vector<16x768xf32>
    %15 = arith.addf %14, %13 : vector<16x768xf32>
    %cst_8 = arith.constant 5.000000e-01 : f32
    %16 = vector.broadcast %cst_8 : f32 to vector<16x768xf32>
    %17 = arith.mulf %16, %15 : vector<16x768xf32>
    %18 = arith.mulf %5, %17 : vector<16x768xf32>
    %19 = vector.extract_strided_slice %18 {offsets = [0, 0], sizes = [16, 512], strides = [1, 1]} : vector<16x768xf32> to vector<16x512xf32>
    %20 = arith.truncf %19 : vector<16x512xf32> to vector<16x512xbf16>
    %21 = vector.extract_strided_slice %18 {offsets = [0, 512], sizes = [16, 256], strides = [1, 1]} : vector<16x768xf32> to vector<16x256xf32>
    %22 = arith.truncf %21 : vector<16x256xf32> to vector<16x256xbf16>
    %c0_9 = arith.constant 0 : index
    %c0_10 = arith.constant 0 : index
    %23 = vector.load %arg4[%c0_9, %c0_10] : memref<512x256xbf16, #tpu.memory_space<vmem>>, vector<512x256xbf16>
    %cst_11 = arith.constant dense<0.000000e+00> : vector<16x256xf32>
    %24 = tpu.matmul %20, %23, %cst_11 {dimension_numbers = #tpu.dot_dimension_numbers<[1], [0], [0], [1], [0, 0, 1, 1], [], []>} : vector<16x512xbf16>, vector<512x256xbf16>, vector<16x256xf32> -> vector<16x256xf32>
    %c0_12 = arith.constant 0 : index
    %c0_13 = arith.constant 0 : index
    %25 = vector.load %arg5[%c0_12, %c0_13] : memref<1x256xf32, #tpu.memory_space<vmem>>, vector<1x256xf32>
    %26 = vector.broadcast %25 : vector<1x256xf32> to vector<16x256xf32>
    %27 = arith.addf %24, %26 : vector<16x256xf32>
    %28 = arith.mulf %27, %27 : vector<16x256xf32>
    %29 = arith.mulf %27, %28 : vector<16x256xf32>
    %cst_14 = arith.constant 4.471500e-02 : f32
    %30 = vector.broadcast %cst_14 : f32 to vector<16x256xf32>
    %31 = arith.mulf %30, %29 : vector<16x256xf32>
    %32 = arith.addf %27, %31 : vector<16x256xf32>
    %cst_15 = arith.constant 0.797884583 : f32
    %33 = vector.broadcast %cst_15 : f32 to vector<16x256xf32>
    %34 = arith.mulf %33, %32 : vector<16x256xf32>
    %35 = math.tanh %34 : vector<16x256xf32>
    %cst_16 = arith.constant 1.000000e+00 : f32
    %36 = vector.broadcast %cst_16 : f32 to vector<16x256xf32>
    %37 = arith.addf %36, %35 : vector<16x256xf32>
    %cst_17 = arith.constant 5.000000e-01 : f32
    %38 = vector.broadcast %cst_17 : f32 to vector<16x256xf32>
    %39 = arith.mulf %38, %37 : vector<16x256xf32>
    %40 = arith.mulf %27, %39 : vector<16x256xf32>
    %41 = arith.truncf %40 : vector<16x256xf32> to vector<16x256xbf16>
    %c0_18 = arith.constant 0 : index
    %c0_19 = arith.constant 0 : index
    %42 = vector.load %arg6[%c0_18, %c0_19] : memref<256x128xbf16, #tpu.memory_space<vmem>>, vector<256x128xbf16>
    %cst_20 = arith.constant dense<0.000000e+00> : vector<16x128xf32>
    %43 = tpu.matmul %41, %42, %cst_20 {dimension_numbers = #tpu.dot_dimension_numbers<[1], [0], [0], [1], [0, 0, 1, 1], [], []>} : vector<16x256xbf16>, vector<256x128xbf16>, vector<16x128xf32> -> vector<16x128xf32>
    %c0_21 = arith.constant 0 : index
    %c0_22 = arith.constant 0 : index
    %44 = vector.load %arg7[%c0_21, %c0_22] : memref<256x128xbf16, #tpu.memory_space<vmem>>, vector<256x128xbf16>
    %cst_23 = arith.constant dense<0.000000e+00> : vector<16x128xf32>
    %45 = tpu.matmul %22, %44, %cst_23 {dimension_numbers = #tpu.dot_dimension_numbers<[1], [0], [0], [1], [0, 0, 1, 1], [], []>} : vector<16x256xbf16>, vector<256x128xbf16>, vector<16x128xf32> -> vector<16x128xf32>
    %46 = arith.addf %43, %45 : vector<16x128xf32>
    %c0_24 = arith.constant 0 : index
    %c0_25 = arith.constant 0 : index
    %47 = vector.load %arg8[%c0_24, %c0_25] : memref<1x128xf32, #tpu.memory_space<vmem>>, vector<1x128xf32>
    %48 = vector.broadcast %47 : vector<1x128xf32> to vector<16x128xf32>
    %49 = arith.addf %46, %48 : vector<16x128xf32>
    %c0_26 = arith.constant 0 : index
    %c0_27 = arith.constant 0 : index
    %50 = vector.load %arg9[%c0_26, %c0_27] : memref<16x128xf32, #tpu.memory_space<vmem>>, vector<16x128xf32>
    tpu.vector_store %arg9[%c0_26, %c0_27], %49 {strides = array<i32>} : memref<16x128xf32, #tpu.memory_space<vmem>>, vector<16x128xf32>,
    return
  }
  func.func @transform_0(%arg0: i32) -> (i32, i32) {
    %c0_i32 = arith.constant 0 : i32
    %c0_i32_0 = arith.constant 0 : i32
    return %arg0, %c0_i32 : i32, i32
  }
  func.func @transform_1(%arg0: i32) -> (i32, i32) {
    %c0_i32 = arith.constant 0 : i32
    %c0_i32_0 = arith.constant 0 : i32
    %c0_i32_1 = arith.constant 0 : i32
    return %c0_i32, %c0_i32_0 : i32, i32
  }
  func.func @transform_2(%arg0: i32) -> (i32, i32) {
    %c0_i32 = arith.constant 0 : i32
    %c0_i32_0 = arith.constant 0 : i32
    %c0_i32_1 = arith.constant 0 : i32
    return %c0_i32, %c0_i32_0 : i32, i32
  }
  func.func @transform_3(%arg0: i32) -> (i32, i32) {
    %c0_i32 = arith.constant 0 : i32
    %c0_i32_0 = arith.constant 0 : i32
    %c0_i32_1 = arith.constant 0 : i32
    return %c0_i32, %c0_i32_0 : i32, i32
  }
  func.func @transform_4(%arg0: i32) -> (i32, i32) {
    %c0_i32 = arith.constant 0 : i32
    %c0_i32_0 = arith.constant 0 : i32
    %c0_i32_1 = arith.constant 0 : i32
    return %c0_i32, %c0_i32_0 : i32, i32
  }
  func.func @transform_5(%arg0: i32) -> (i32, i32) {
    %c0_i32 = arith.constant 0 : i32
    %c0_i32_0 = arith.constant 0 : i32
    %c0_i32_1 = arith.constant 0 : i32
    return %c0_i32, %c0_i32_0 : i32, i32
  }
  func.func @transform_6(%arg0: i32) -> (i32, i32) {
    %c0_i32 = arith.constant 0 : i32
    %c0_i32_0 = arith.constant 0 : i32
    %c0_i32_1 = arith.constant 0 : i32
    return %c0_i32, %c0_i32_0 : i32, i32
  }
  func.func @transform_7(%arg0: i32) -> (i32, i32) {
    %c0_i32 = arith.constant 0 : i32
    %c0_i32_0 = arith.constant 0 : i32
    %c0_i32_1 = arith.constant 0 : i32
    return %c0_i32, %c0_i32_0 : i32, i32
  }
  func.func @transform_8(%arg0: i32) -> (i32, i32) {
    %c0_i32 = arith.constant 0 : i32
    %c0_i32_0 = arith.constant 0 : i32
    return %arg0, %c0_i32 : i32, i32
  }
}

</mosaic_0001>

<llo_original>
// kernel: tpu_custom_call.1
$region0: #{tpu_custom_call.1}
  #allocation0 [shape = 'u32[]', space=smem, size = 0x4, offset = 0x4, fixed_abs, tag = 'smem constant byte address 0x4 - core index']
  #allocation1 [shape = 'u32[144,128]{1,0:T(1,128)}', space=vmem, size = 0x12000, scoped, tag = 'internal scratch']
  %s0 = inlined_call_operand.hbm [shape: bf16[16,32], index: 0, kind: input, shape index: {}]
  %s1 = inlined_call_operand.hbm [shape: bf16[32,768], index: 1, kind: input, shape index: {}]
  %s2 = inlined_call_operand.vmem [shape: f32[1,768], index: 2, kind: input, shape index: {}]
  %s3 = inlined_call_operand.hbm [shape: bf16[512,256], index: 3, kind: input, shape index: {}]
  %s4 = inlined_call_operand.vmem [shape: f32[1,256], index: 4, kind: input, shape index: {}]
  %s5 = inlined_call_operand.hbm [shape: bf16[256,128], index: 5, kind: input, shape index: {}]
  %s6 = inlined_call_operand.hbm [shape: bf16[256,128], index: 6, kind: input, shape index: {}]
  %s7 = inlined_call_operand.vmem [shape: f32[1,128], index: 7, kind: input, shape index: {}]
  %s8 = inlined_call_operand.hbm [shape: f32[16,128], index: 8, kind: output, shape index: {}]
  %s9 = sld [smem:[#allocation0]]
  $region62: #{tpu_custom_call.1} parent=0
    _
  %s11 = ssub.s32 1, %s9
  %s12 = scalar_select 0, %s11, %s9
  $region1: #{tpu_custom_call.1} parent=0
    #allocation2 [shape = 'u8[4096]{0}', space=vmem, size = 0x1000, scoped, tag = 'input window, operand 0, single buffered']
    #allocation3 [shape = 's32[1]{0}', space=sflag, size = 0x4, scoped, tag = 'scoped memory for tpu_custom_call.1']
    #allocation4 [shape = 's32[1]{0}', space=sflag, size = 0x4, scoped, tag = 'scoped memory for tpu_custom_call.1']
    #allocation5 [shape = 'u8[49152]{0}', space=vmem, size = 0xc000, scoped, tag = 'input window, operand 1, single buffered']
    #allocation6 [shape = 's32[1]{0}', space=sflag, size = 0x4, scoped, tag = 'scoped memory for tpu_custom_call.1']
    #allocation7 [shape = 'u8[262144]{0}', space=vmem, size = 0x40000, scoped, tag = 'input window, operand 3, single buffered']
    #allocation8 [shape = 'u8[65536]{0}', space=vmem, size = 0x10000, scoped, tag = 'input window, operand 5, single buffered']
    #allocation9 [shape = 's32[1]{0}', space=sflag, size = 0x4, scoped, tag = 'scoped memory for tpu_custom_call.1']
    #allocation10 [shape = 'u8[65536]{0}', space=vmem, size = 0x10000, scoped, tag = 'input window, operand 6, single buffered']
    #allocation11 [shape = 'u8[8192]{0}', space=vmem, size = 0x2000, scoped, tag = 'output window, operand 0, single buffered']
    %13 = vsyncpa [#allocation3], 0
    %14 = vsyncpa [#allocation6], 0
    %15 = vsyncpa [#allocation9], 0
    %16 = vsyncpa [#allocation4], 0
    // Predicated region
    $region2: #{tpu_custom_call.1} parent=1 // pred_check
      _
    $region3: #{tpu_custom_call.1} parent=1 // pred_check_branch
      %18 = sbr.rel (0) target = $region5
    $region4: #{tpu_custom_call.1} parent=1 // pred_region
      %s20 = ssub.s32 128, 128
      %21 = vsyncadd [#allocation3], %s20
      %s22 = sshll.u32 [#allocation2], 4
      %s23 = int_to_ptr.vmem [resolvable:$true] %s22
      %28 = dma.hbm_to_vmem [thread:$0]  %s0, 128, %s23, [#allocation3], 64, 64, 4
    $region5: #{tpu_custom_call.1} parent=1 // pred_fallthru
      _
    // Predicated region
    $region6: #{tpu_custom_call.1} parent=1 // pred_check
      _
    $region7: #{tpu_custom_call.1} parent=1 // pred_check_branch
      %30 = sbr.rel (0) target = $region9
    $region8: #{tpu_custom_call.1} parent=1 // pred_region
      %s32 = ssub.s32 1536, 1536
      %33 = vsyncadd [#allocation6], %s32
      %s34 = sshll.u32 [#allocation5], 4
      %s35 = int_to_ptr.vmem [resolvable:$true] %s34
      %40 = dma.hbm_to_vmem [thread:$0]  %s1, 1536, %s35, [#allocation6], 384, 384, 24
    $region9: #{tpu_custom_call.1} parent=1 // pred_fallthru
      _
    // Predicated region
    $region10: #{tpu_custom_call.1} parent=1 // pred_check
      _
    $region11: #{tpu_custom_call.1} parent=1 // pred_check_branch
      %42 = sbr.rel (0) target = $region13
    $region12: #{tpu_custom_call.1} parent=1 // pred_region
      _
    $region13: #{tpu_custom_call.1} parent=1 // pred_fallthru
      _
    // Predicated region
    $region14: #{tpu_custom_call.1} parent=1 // pred_check
      _
    $region15: #{tpu_custom_call.1} parent=1 // pred_check_branch
      %44 = sbr.rel (0) target = $region17
    $region16: #{tpu_custom_call.1} parent=1 // pred_region
      %s46 = ssub.s32 8192, 8192
      %47 = vsyncadd [#allocation6], %s46
      %s48 = sshll.u32 [#allocation7], 4
      %s49 = int_to_ptr.vmem [resolvable:$true] %s48
      %54 = dma.hbm_to_vmem [thread:$0]  %s3, 8192, %s49, [#allocation6], 128, 128, 8
    $region17: #{tpu_custom_call.1} parent=1 // pred_fallthru
      _
    // Predicated region
    $region18: #{tpu_custom_call.1} parent=1 // pred_check
      _
    $region19: #{tpu_custom_call.1} parent=1 // pred_check_branch
      %56 = sbr.rel (0) target = $region21
    $region20: #{tpu_custom_call.1} parent=1 // pred_region
      _
    $region21: #{tpu_custom_call.1} parent=1 // pred_fallthru
      _
    // Predicated region
    $region22: #{tpu_custom_call.1} parent=1 // pred_check
      _
    $region23: #{tpu_custom_call.1} parent=1 // pred_check_branch
      %58 = sbr.rel (0) target = $region25
    $region24: #{tpu_custom_call.1} parent=1 // pred_region
      %s60 = ssub.s32 2048, 2048
      %61 = vsyncadd [#allocation9], %s60
      %s62 = sshll.u32 [#allocation8], 4
      %s63 = int_to_ptr.vmem [resolvable:$true] %s62
      %68 = dma.hbm_to_vmem [thread:$0]  %s5, 2048, %s63, [#allocation9], 64, 64, 4
    $region25: #{tpu_custom_call.1} parent=1 // pred_fallthru
      _
    // Predicated region
    $region26: #{tpu_custom_call.1} parent=1 // pred_check
      _
    $region27: #{tpu_custom_call.1} parent=1 // pred_check_branch
      %70 = sbr.rel (0) target = $region29
    $region28: #{tpu_custom_call.1} parent=1 // pred_region
      %s72 = ssub.s32 2048, 2048
      %73 = vsyncadd [#allocation9], %s72
      %s74 = sshll.u32 [#allocation10], 4
      %s75 = int_to_ptr.vmem [resolvable:$true] %s74
      %80 = dma.hbm_to_vmem [thread:$0]  %s6, 2048, %s75, [#allocation9], 64, 64, 4
    $region29: #{tpu_custom_call.1} parent=1 // pred_fallthru
      _
    // Predicated region
    $region30: #{tpu_custom_call.1} parent=1 // pred_check
      _
    $region31: #{tpu_custom_call.1} parent=1 // pred_check_branch
      %82 = sbr.rel (0) target = $region33
    $region32: #{tpu_custom_call.1} parent=1 // pred_region
      _
    $region33: #{tpu_custom_call.1} parent=1 // pred_fallthru
      _
    // Predicated region
    $region34: #{tpu_custom_call.1} parent=1 // pred_check
      _
    $region35: #{tpu_custom_call.1} parent=1 // pred_check_branch
      %84 = sbr.rel (0) target = $region37
    $region36: #{tpu_custom_call.1} parent=1 // pred_region
      %85 = dma.done [#allocation3], 128
    $region37: #{tpu_custom_call.1} parent=1 // pred_fallthru
      _
    // Predicated region
    $region38: #{tpu_custom_call.1} parent=1 // pred_check
      _
    $region39: #{tpu_custom_call.1} parent=1 // pred_check_branch
      %87 = sbr.rel (0) target = $region41
    $region40: #{tpu_custom_call.1} parent=1 // pred_region
      %88 = dma.done [#allocation6], 1536
    $region41: #{tpu_custom_call.1} parent=1 // pred_fallthru
      _
    // Predicated region
    $region42: #{tpu_custom_call.1} parent=1 // pred_check
      _
    $region43: #{tpu_custom_call.1} parent=1 // pred_check_branch
      %90 = sbr.rel (0) target = $region45
    $region44: #{tpu_custom_call.1} parent=1 // pred_region
      %91 = dma.done [#allocation6], 8192
    $region45: #{tpu_custom_call.1} parent=1 // pred_fallthru
      _
    // Predicated region
    $region46: #{tpu_custom_call.1} parent=1 // pred_check
      _
    $region47: #{tpu_custom_call.1} parent=1 // pred_check_branch
      %93 = sbr.rel (0) target = $region49
    $region48: #{tpu_custom_call.1} parent=1 // pred_region
      %94 = dma.done [#allocation9], 2048
    $region49: #{tpu_custom_call.1} parent=1 // pred_fallthru
      _
    // Predicated region
    $region50: #{tpu_custom_call.1} parent=1 // pred_check
      _
    $region51: #{tpu_custom_call.1} parent=1 // pred_check_branch
      %96 = sbr.rel (0) target = $region53
    $region52: #{tpu_custom_call.1} parent=1 // pred_region
      %97 = dma.done [#allocation9], 2048
    $region53: #{tpu_custom_call.1} parent=1 // pred_fallthru
      _
    %v99 = vld [vmem:[#allocation2] sm:$0xf]
    %v100 = vld [vmem:[#allocation2 + $0x4] sm:$0xf]
    %v101 = vld [vmem:[#allocation5] sm:$0xff]
    %v102 = vld [vmem:[#allocation5 + $0x8] sm:$0xff]
    %v103 = vld [vmem:[#allocation5 + $0x10] sm:$0xff]
    %v104 = vld [vmem:[#allocation5 + $0x18] sm:$0xff]
    %v105 = vld [vmem:[#allocation5 + $0x20] sm:$0xff]
    %v106 = vld [vmem:[#allocation5 + $0x28] sm:$0xff]
    %v107 = vld [vmem:[#allocation5 + $0x30] sm:$0xff]
    %v108 = vld [vmem:[#allocation5 + $0x38] sm:$0xff]
    %v109 = vld [vmem:[#allocation5 + $0x40] sm:$0xff]
    %v110 = vld [vmem:[#allocation5 + $0x48] sm:$0xff]
    %v111 = vld [vmem:[#allocation5 + $0x50] sm:$0xff]
    %v112 = vld [vmem:[#allocation5 + $0x58] sm:$0xff]
    %v113 = vld [vmem:[%s2] sm:$0x3f]
    %v115 = vlaneseq
    %v116 = vshrl.u32 %v115, 7
    %v117 = vsub.s32 0, %v116
    %v118 = vrot.slane %v113, %v117
    %v119 = vlaneseq
    %v120 = vshrl.u32 %v119, 7
    %v121 = vsub.s32 1, %v120
    %v122 = vrot.slane %v113, %v121
    %v123 = vlaneseq
    %v124 = vshrl.u32 %v123, 7
    %v125 = vsub.s32 2, %v124
    %v126 = vrot.slane %v113, %v125
    %v127 = vlaneseq
    %v128 = vshrl.u32 %v127, 7
    %v129 = vsub.s32 3, %v128
    %v130 = vrot.slane %v113, %v129
    %v131 = vlaneseq
    %v132 = vshrl.u32 %v131, 7
    %v133 = vsub.s32 4, %v132
    %v134 = vrot.slane %v113, %v133
    %v135 = vlaneseq
    %v136 = vshrl.u32 %v135, 7
    %v137 = vsub.s32 5, %v136
    %v138 = vrot.slane %v113, %v137
    %v147 = vunpack.c.l.b16 %v99
    %v148 = vunpack.c.l.b16 %v100
    %v149 = vpack.c.b16 %v148, %v147
    %v162 = vunpack.c.l.b16 %v101
    %v163 = vunpack.c.h.b16 %v101
    %v164 = vunpack.c.l.b16 %v102
    %v165 = vunpack.c.h.b16 %v102
    %v166 = vunpack.c.l.b16 %v103
    %v167 = vunpack.c.h.b16 %v103
    %v168 = vunpack.c.l.b16 %v104
    %v169 = vunpack.c.h.b16 %v104
    %v170 = vunpack.c.l.b16 %v105
    %v171 = vunpack.c.h.b16 %v105
    %v172 = vunpack.c.l.b16 %v106
    %v173 = vunpack.c.h.b16 %v106
    %v174 = vunpack.c.l.b16 %v107
    %v175 = vunpack.c.h.b16 %v107
    %v176 = vunpack.c.l.b16 %v108
    %v177 = vunpack.c.h.b16 %v108
    %v178 = vunpack.c.l.b16 %v109
    %v179 = vunpack.c.h.b16 %v109
    %v180 = vunpack.c.l.b16 %v110
    %v181 = vunpack.c.h.b16 %v110
    %v182 = vunpack.c.l.b16 %v111
    %v183 = vunpack.c.h.b16 %v111
    %v184 = vunpack.c.l.b16 %v112
    %v185 = vunpack.c.h.b16 %v112
    %v186 = vpack.c.b16 %v168, %v162
    %v187 = vpack.c.b16 %v169, %v163
    %v188 = vpack.c.b16 %v170, %v164
    %v189 = vpack.c.b16 %v171, %v165
    %v190 = vpack.c.b16 %v172, %v166
    %v191 = vpack.c.b16 %v173, %v167
    %v192 = vpack.c.b16 %v180, %v174
    %v193 = vpack.c.b16 %v181, %v175
    %v194 = vpack.c.b16 %v182, %v176
    %v195 = vpack.c.b16 %v183, %v177
    %v196 = vpack.c.b16 %v184, %v178
    %v197 = vpack.c.b16 %v185, %v179
    %vm210 = vcmask 261120
    %v212 = vsel %vm210, %v149, 0
    %214 = vmatprep.subr.bf16.mxu0 %v187
    %215 = vmatpush1.bf16.msra.mxu0 %v186
    %216 = vmatprep.subr.bf16.mxu0 %v193
    %217 = vmatpush1.bf16.msra.mxu0 %v192
    %218 = vmatprep.subr.bf16.mxu0 0
    %219 = vmatpush1.bf16.msra.mxu0 0
    %220 = vmatprep.subr.bf16.mxu0 0
    %221 = vmatpush1.bf16.msra.mxu0 0
    %222 = vmatprep.subr.bf16.mxu0 0
    %223 = vmatpush1.bf16.msra.mxu0 0
    %224 = vmatprep.subr.bf16.mxu0 0
    %225 = vmatpush1.bf16.msra.mxu0 0
    %226 = vmatprep.subr.bf16.mxu0 0
    %227 = vmatpush1.bf16.msra.mxu0 0
    %228 = vmatprep.subr.bf16.mxu0 0
    %229 = vmatpush1.bf16.msra.mxu0 0
    %230 = vmatprep.subr.bf16.mxu0 0
    %231 = vmatpush1.bf16.msra.mxu0 0
    %232 = vmatprep.subr.bf16.mxu0 0
    %233 = vmatpush1.bf16.msra.mxu0 0
    %234 = vmatprep.subr.bf16.mxu0 0
    %235 = vmatpush1.bf16.msra.mxu0 0
    %236 = vmatprep.subr.bf16.mxu0 0
    %237 = vmatpush1.bf16.msra.mxu0 0
    %238 = vmatprep.subr.bf16.mxu0 0
    %239 = vmatpush1.bf16.msra.mxu0 0
    %240 = vmatprep.subr.bf16.mxu0 0
    %241 = vmatpush1.bf16.msra.mxu0 0
    %242 = vmatprep.subr.bf16.mxu0 0
    %243 = vmatpush1.bf16.msra.mxu0 0
    %244 = vmatprep.subr.bf16.mxu0 0
    %245 = vmatpush1.bf16.msra.mxu0 0
    %246 = vmatprep.mubr.bf16.mxu0 0
    %247 = vmatmul.mubr.bf16.gmra.mrb[0].mxu0 %v212
    %v248 = vpop.f32.mrb[0].mxu0
    %v249 = vadd.f32 %v118, %v248
    %v250 = vpop.f32.mrb[0].mxu0
    %v251 = vadd.f32 %v122, %v250
    %v252 = vpop.f32.mrb[0].mxu0
    %v253 = vadd.f32 %v118, %v252
    %v254 = vpop.f32.mrb[0].mxu0
    %v255 = vadd.f32 %v122, %v254
    %256 = vdwg.mxu0
    %257 = vmatprep.subr.bf16.mxu0 %v189
    %258 = vmatpush1.bf16.msra.mxu0 %v188
    %259 = vmatprep.subr.bf16.mxu0 %v195
    %260 = vmatpush1.bf16.msra.mxu0 %v194
    %261 = vmatprep.subr.bf16.mxu0 0
    %262 = vmatpush1.bf16.msra.mxu0 0
    %263 = vmatprep.subr.bf16.mxu0 0
    %264 = vmatpush1.bf16.msra.mxu0 0
    %265 = vmatprep.subr.bf16.mxu0 0
    %266 = vmatpush1.bf16.msra.mxu0 0
    %267 = vmatprep.subr.bf16.mxu0 0
    %268 = vmatpush1.bf16.msra.mxu0 0
    %269 = vmatprep.subr.bf16.mxu0 0
    %270 = vmatpush1.bf16.msra.mxu0 0
    %271 = vmatprep.subr.bf16.mxu0 0
    %272 = vmatpush1.bf16.msra.mxu0 0
    %273 = vmatprep.subr.bf16.mxu0 0
    %274 = vmatpush1.bf16.msra.mxu0 0
    %275 = vmatprep.subr.bf16.mxu0 0
    %276 = vmatpush1.bf16.msra.mxu0 0
    %277 = vmatprep.subr.bf16.mxu0 0
    %278 = vmatpush1.bf16.msra.mxu0 0
    %279 = vmatprep.subr.bf16.mxu0 0
    %280 = vmatpush1.bf16.msra.mxu0 0
    %281 = vmatprep.subr.bf16.mxu0 0
    %282 = vmatpush1.bf16.msra.mxu0 0
    %283 = vmatprep.subr.bf16.mxu0 0
    %284 = vmatpush1.bf16.msra.mxu0 0
    %285 = vmatprep.subr.bf16.mxu0 0
    %286 = vmatpush1.bf16.msra.mxu0 0
    %287 = vmatprep.subr.bf16.mxu0 0
    %288 = vmatpush1.bf16.msra.mxu0 0
    %289 = vmatprep.mubr.bf16.mxu0 0
    %290 = vmatmul.mubr.bf16.gmra.mrb[0].mxu0 %v212
    %v291 = vpop.f32.mrb[0].mxu0
    %v292 = vadd.f32 %v126, %v291
    %v293 = vpop.f32.mrb[0].mxu0
    %v294 = vadd.f32 %v130, %v293
    %v295 = vpop.f32.mrb[0].mxu0
    %v296 = vadd.f32 %v126, %v295
    %v297 = vpop.f32.mrb[0].mxu0
    %v298 = vadd.f32 %v130, %v297
    %299 = vdwg.mxu0
    %300 = vmatprep.subr.bf16.mxu0 %v191
    %301 = vmatpush1.bf16.msra.mxu0 %v190
    %302 = vmatprep.subr.bf16.mxu0 %v197
    %303 = vmatpush1.bf16.msra.mxu0 %v196
    %304 = vmatprep.subr.bf16.mxu0 0
    %305 = vmatpush1.bf16.msra.mxu0 0
    %306 = vmatprep.subr.bf16.mxu0 0
    %307 = vmatpush1.bf16.msra.mxu0 0
    %308 = vmatprep.subr.bf16.mxu0 0
    %309 = vmatpush1.bf16.msra.mxu0 0
    %310 = vmatprep.subr.bf16.mxu0 0
    %311 = vmatpush1.bf16.msra.mxu0 0
    %312 = vmatprep.subr.bf16.mxu0 0
    %313 = vmatpush1.bf16.msra.mxu0 0
    %314 = vmatprep.subr.bf16.mxu0 0
    %315 = vmatpush1.bf16.msra.mxu0 0
    %316 = vmatprep.subr.bf16.mxu0 0
    %317 = vmatpush1.bf16.msra.mxu0 0
    %318 = vmatprep.subr.bf16.mxu0 0
    %319 = vmatpush1.bf16.msra.mxu0 0
    %320 = vmatprep.subr.bf16.mxu0 0
    %321 = vmatpush1.bf16.msra.mxu0 0
    %322 = vmatprep.subr.bf16.mxu0 0
    %323 = vmatpush1.bf16.msra.mxu0 0
    %324 = vmatprep.subr.bf16.mxu0 0
    %325 = vmatpush1.bf16.msra.mxu0 0
    %326 = vmatprep.subr.bf16.mxu0 0
    %327 = vmatpush1.bf16.msra.mxu0 0
    %328 = vmatprep.subr.bf16.mxu0 0
    %329 = vmatpush1.bf16.msra.mxu0 0
    %330 = vmatprep.subr.bf16.mxu0 0
    %331 = vmatpush1.bf16.msra.mxu0 0
    %332 = vmatprep.mubr.bf16.mxu0 0
    %333 = vmatmul.mubr.bf16.gmra.mrb[0].mxu0 %v212
    %v334 = vpop.f32.mrb[0].mxu0
    %v335 = vadd.f32 %v134, %v334
    %v336 = vpop.f32.mrb[0].mxu0
    %v337 = vadd.f32 %v138, %v336
    %v338 = vpop.f32.mrb[0].mxu0
    %v339 = vadd.f32 %v134, %v338
    %v340 = vpop.f32.mrb[0].mxu0
    %v341 = vadd.f32 %v138, %v340
    %342 = vdwg.mxu0
    %v343 = vmul.f32 %v249, %v249
    %v344 = vmul.f32 %v251, %v251
    %v345 = vmul.f32 %v292, %v292
    %v346 = vmul.f32 %v294, %v294
    %v347 = vmul.f32 %v335, %v335
    %v348 = vmul.f32 %v337, %v337
    %v349 = vmul.f32 %v253, %v253
    %v350 = vmul.f32 %v255, %v255
    %v351 = vmul.f32 %v296, %v296
    %v352 = vmul.f32 %v298, %v298
    %v353 = vmul.f32 %v339, %v339
    %v354 = vmul.f32 %v341, %v341
    %v355 = vmul.f32 %v249, %v343
    %v356 = vmul.f32 %v251, %v344
    %v357 = vmul.f32 %v292, %v345
    %v358 = vmul.f32 %v294, %v346
    %v359 = vmul.f32 %v335, %v347
    %v360 = vmul.f32 %v337, %v348
    %v361 = vmul.f32 %v253, %v349
    %v362 = vmul.f32 %v255, %v350
    %v363 = vmul.f32 %v296, %v351
    %v364 = vmul.f32 %v298, %v352
    %v365 = vmul.f32 %v339, %v353
    %v366 = vmul.f32 %v341, %v354
    %v367 = vmul.f32 %v355, 0.044715
    %v368 = vmul.f32 %v356, 0.044715
    %v369 = vmul.f32 %v357, 0.044715
    %v370 = vmul.f32 %v358, 0.044715
    %v371 = vmul.f32 %v359, 0.044715
    %v372 = vmul.f32 %v360, 0.044715
    %v373 = vmul.f32 %v361, 0.044715
    %v374 = vmul.f32 %v362, 0.044715
    %v375 = vmul.f32 %v363, 0.044715
    %v376 = vmul.f32 %v364, 0.044715
    %v377 = vmul.f32 %v365, 0.044715
    %v378 = vmul.f32 %v366, 0.044715
    %v379 = vadd.f32 %v249, %v367
    %v380 = vadd.f32 %v251, %v368
    %v381 = vadd.f32 %v292, %v369
    %v382 = vadd.f32 %v294, %v370
    %v383 = vadd.f32 %v335, %v371
    %v384 = vadd.f32 %v337, %v372
    %v385 = vadd.f32 %v253, %v373
    %v386 = vadd.f32 %v255, %v374
    %v387 = vadd.f32 %v296, %v375
    %v388 = vadd.f32 %v298, %v376
    %v389 = vadd.f32 %v339, %v377
    %v390 = vadd.f32 %v341, %v378
    %v391 = vmul.f32 %v379, 0.7978846
    %v392 = vmul.f32 %v380, 0.7978846
    %v393 = vmul.f32 %v381, 0.7978846
    %v394 = vmul.f32 %v382, 0.7978846
    %v395 = vmul.f32 %v383, 0.7978846
    %v396 = vmul.f32 %v384, 0.7978846
    %v397 = vmul.f32 %v385, 0.7978846
    %v398 = vmul.f32 %v386, 0.7978846
    %v399 = vmul.f32 %v387, 0.7978846
    %v400 = vmul.f32 %v388, 0.7978846
    %v401 = vmul.f32 %v389, 0.7978846
    %v402 = vmul.f32 %v390, 0.7978846
    %v403 = vtanh.pop %v391
    %v404 = vtanh.pop %v392
    %v405 = vtanh.pop %v393
    %v406 = vtanh.pop %v394
    %v407 = vtanh.pop %v395
    %v408 = vtanh.pop %v396
    %v409 = vtanh.pop %v397
    %v410 = vtanh.pop %v398
    %v411 = vtanh.pop %v399
    %v412 = vtanh.pop %v400
    %v413 = vtanh.pop %v401
    %v414 = vtanh.pop %v402
    %v415 = vadd.f32 %v403, 1.0
    %v416 = vadd.f32 %v404, 1.0
    %v417 = vadd.f32 %v405, 1.0
    %v418 = vadd.f32 %v406, 1.0
    %v419 = vadd.f32 %v407, 1.0
    %v420 = vadd.f32 %v408, 1.0
    %v421 = vadd.f32 %v409, 1.0
    %v422 = vadd.f32 %v410, 1.0
    %v423 = vadd.f32 %v411, 1.0
    %v424 = vadd.f32 %v412, 1.0
    %v425 = vadd.f32 %v413, 1.0
    %v426 = vadd.f32 %v414, 1.0
    %v427 = vmul.f32 %v415, 0.5
    %v428 = vmul.f32 %v416, 0.5
    %v429 = vmul.f32 %v417, 0.5
    %v430 = vmul.f32 %v418, 0.5
    %v431 = vmul.f32 %v419, 0.5
    %v432 = vmul.f32 %v420, 0.5
    %v433 = vmul.f32 %v421, 0.5
    %v434 = vmul.f32 %v422, 0.5
    %v435 = vmul.f32 %v423, 0.5
    %v436 = vmul.f32 %v424, 0.5
    %v437 = vmul.f32 %v425, 0.5
    %v438 = vmul.f32 %v426, 0.5
    %v439 = vmul.f32 %v249, %v427
    %v440 = vmul.f32 %v251, %v428
    %v441 = vmul.f32 %v292, %v429
    %v442 = vmul.f32 %v294, %v430
    %v443 = vmul.f32 %v335, %v431
    %v444 = vmul.f32 %v337, %v432
    %v445 = vmul.f32 %v253, %v433
    %v446 = vmul.f32 %v255, %v434
    %v447 = vmul.f32 %v296, %v435
    %v448 = vmul.f32 %v298, %v436
    %v449 = vmul.f32 %v339, %v437
    %v450 = vmul.f32 %v341, %v438
    %v451 = vpack.c.bf16 %v445, %v439
    %v452 = vpack.c.bf16 %v446, %v440
    %v453 = vpack.c.bf16 %v447, %v441
    %v454 = vpack.c.bf16 %v448, %v442
    %v455 = vpack.c.bf16 %v449, %v443
    %v456 = vpack.c.bf16 %v450, %v444
    %v457 = vld [vmem:[#allocation7] sm:$0xff]
    %v458 = vld [vmem:[#allocation7 + $0x8] sm:$0xff]
    %v459 = vld [vmem:[#allocation7 + $0x10] sm:$0xff]
    %v460 = vld [vmem:[#allocation7 + $0x18] sm:$0xff]
    %v461 = vld [vmem:[#allocation7 + $0x20] sm:$0xff]
    %v462 = vld [vmem:[#allocation7 + $0x28] sm:$0xff]
    %v463 = vld [vmem:[#allocation7 + $0x30] sm:$0xff]
    %v464 = vld [vmem:[#allocation7 + $0x38] sm:$0xff]
    %v465 = vld [vmem:[#allocation7 + $0x40] sm:$0xff]
    %v466 = vld [vmem:[#allocation7 + $0x48] sm:$0xff]
    %v467 = vld [vmem:[#allocation7 + $0x50] sm:$0xff]
    %v468 = vld [vmem:[#allocation7 + $0x58] sm:$0xff]
    %v469 = vld [vmem:[#allocation7 + $0x60] sm:$0xff]
    %v470 = vld [vmem:[#allocation7 + $0x68] sm:$0xff]
    %v471 = vld [vmem:[#allocation7 + $0x70] sm:$0xff]
    %v472 = vld [vmem:[#allocation7 + $0x78] sm:$0xff]
    %v473 = vld [vmem:[#allocation7 + $0x80] sm:$0xff]
    %v474 = vld [vmem:[#allocation7 + $0x88] sm:$0xff]
    %v475 = vld [vmem:[#allocation7 + $0x90] sm:$0xff]
    %v476 = vld [vmem:[#allocation7 + $0x98] sm:$0xff]
    %v477 = vld [vmem:[#allocation7 + $0xa0] sm:$0xff]
    %v478 = vld [vmem:[#allocation7 + $0xa8] sm:$0xff]
    %v479 = vld [vmem:[#allocation7 + $0xb0] sm:$0xff]
    %v480 = vld [vmem:[#allocation7 + $0xb8] sm:$0xff]
    %v481 = vld [vmem:[#allocation7 + $0xc0] sm:$0xff]
    %v482 = vld [vmem:[#allocation7 + $0xc8] sm:$0xff]
    %v483 = vld [vmem:[#allocation7 + $0xd0] sm:$0xff]
    %v484 = vld [vmem:[#allocation7 + $0xd8] sm:$0xff]
    %v485 = vld [vmem:[#allocation7 + $0xe0] sm:$0xff]
    %v486 = vld [vmem:[#allocation7 + $0xe8] sm:$0xff]
    %v487 = vld [vmem:[#allocation7 + $0xf0] sm:$0xff]
    %v488 = vld [vmem:[#allocation7 + $0xf8] sm:$0xff]
    %v489 = vld [vmem:[#allocation7 + $0x100] sm:$0xff]
    %v490 = vld [vmem:[#allocation7 + $0x108] sm:$0xff]
    %v491 = vld [vmem:[#allocation7 + $0x110] sm:$0xff]
    %v492 = vld [vmem:[#allocation7 + $0x118] sm:$0xff]
    %v493 = vld [vmem:[#allocation7 + $0x120] sm:$0xff]
    %v494 = vld [vmem:[#allocation7 + $0x128] sm:$0xff]
    %v495 = vld [vmem:[#allocation7 + $0x130] sm:$0xff]
    %v496 = vld [vmem:[#allocation7 + $0x138] sm:$0xff]
    %v497 = vld [vmem:[#allocation7 + $0x140] sm:$0xff]
    %v498 = vld [vmem:[#allocation7 + $0x148] sm:$0xff]
    %v499 = vld [vmem:[#allocation7 + $0x150] sm:$0xff]
    %v500 = vld [vmem:[#allocation7 + $0x158] sm:$0xff]
    %v501 = vld [vmem:[#allocation7 + $0x160] sm:$0xff]
    %v502 = vld [vmem:[#allocation7 + $0x168] sm:$0xff]
    %v503 = vld [vmem:[#allocation7 + $0x170] sm:$0xff]
    %v504 = vld [vmem:[#allocation7 + $0x178] sm:$0xff]
    %v505 = vld [vmem:[#allocation7 + $0x180] sm:$0xff]
    %v506 = vld [vmem:[#allocation7 + $0x188] sm:$0xff]
    %v507 = vld [vmem:[#allocation7 + $0x190] sm:$0xff]
    %v508 = vld [vmem:[#allocation7 + $0x198] sm:$0xff]
    %v509 = vld [vmem:[#allocation7 + $0x1a0] sm:$0xff]
    %v510 = vld [vmem:[#allocation7 + $0x1a8] sm:$0xff]
    %v511 = vld [vmem:[#allocation7 + $0x1b0] sm:$0xff]
    %v512 = vld [vmem:[#allocation7 + $0x1b8] sm:$0xff]
    %v513 = vld [vmem:[#allocation7 + $0x1c0] sm:$0xff]
    %v514 = vld [vmem:[#allocation7 + $0x1c8] sm:$0xff]
    %v515 = vld [vmem:[#allocation7 + $0x1d0] sm:$0xff]
    %v516 = vld [vmem:[#allocation7 + $0x1d8] sm:$0xff]
    %v517 = vld [vmem:[#allocation7 + $0x1e0] sm:$0xff]
    %v518 = vld [vmem:[#allocation7 + $0x1e8] sm:$0xff]
    %v519 = vld [vmem:[#allocation7 + $0x1f0] sm:$0xff]
    %v520 = vld [vmem:[#allocation7 + $0x1f8] sm:$0xff]
    %v521 = vld [vmem:[%s4] sm:$0x3]
    %v523 = vlaneseq
    %v524 = vshrl.u32 %v523, 7
    %v525 = vsub.s32 0, %v524
    %v526 = vrot.slane %v521, %v525
    %v527 = vlaneseq
    %v528 = vshrl.u32 %v527, 7
    %v529 = vsub.s32 1, %v528
    %v530 = vrot.slane %v521, %v529
    %v597 = vunpack.c.l.b16 %v457
    %v598 = vunpack.c.h.b16 %v457
    %v599 = vunpack.c.l.b16 %v458
    %v600 = vunpack.c.h.b16 %v458
    %v601 = vunpack.c.l.b16 %v459
    %v602 = vunpack.c.h.b16 %v459
    %v603 = vunpack.c.l.b16 %v460
    %v604 = vunpack.c.h.b16 %v460
    %v605 = vunpack.c.l.b16 %v461
    %v606 = vunpack.c.h.b16 %v461
    %v607 = vunpack.c.l.b16 %v462
    %v608 = vunpack.c.h.b16 %v462
    %v609 = vunpack.c.l.b16 %v463
    %v610 = vunpack.c.h.b16 %v463
    %v611 = vunpack.c.l.b16 %v464
    %v612 = vunpack.c.h.b16 %v464
    %v613 = vunpack.c.l.b16 %v465
    %v614 = vunpack.c.h.b16 %v465
    %v615 = vunpack.c.l.b16 %v466
    %v616 = vunpack.c.h.b16 %v466
    %v617 = vunpack.c.l.b16 %v467
    %v618 = vunpack.c.h.b16 %v467
    %v619 = vunpack.c.l.b16 %v468
    %v620 = vunpack.c.h.b16 %v468
    %v621 = vunpack.c.l.b16 %v469
    %v622 = vunpack.c.h.b16 %v469
    %v623 = vunpack.c.l.b16 %v470
    %v624 = vunpack.c.h.b16 %v470
    %v625 = vunpack.c.l.b16 %v471
    %v626 = vunpack.c.h.b16 %v471
    %v627 = vunpack.c.l.b16 %v472
    %v628 = vunpack.c.h.b16 %v472
    %v629 = vunpack.c.l.b16 %v473
    %v630 = vunpack.c.h.b16 %v473
    %v631 = vunpack.c.l.b16 %v474
    %v632 = vunpack.c.h.b16 %v474
    %v633 = vunpack.c.l.b16 %v475
    %v634 = vunpack.c.h.b16 %v475
    %v635 = vunpack.c.l.b16 %v476
    %v636 = vunpack.c.h.b16 %v476
    %v637 = vunpack.c.l.b16 %v477
    %v638 = vunpack.c.h.b16 %v477
    %v639 = vunpack.c.l.b16 %v478
    %v640 = vunpack.c.h.b16 %v478
    %v641 = vunpack.c.l.b16 %v479
    %v642 = vunpack.c.h.b16 %v479
    %v643 = vunpack.c.l.b16 %v480
    %v644 = vunpack.c.h.b16 %v480
    %v645 = vunpack.c.l.b16 %v481
    %v646 = vunpack.c.h.b16 %v481
    %v647 = vunpack.c.l.b16 %v482
    %v648 = vunpack.c.h.b16 %v482
    %v649 = vunpack.c.l.b16 %v483
    %v650 = vunpack.c.h.b16 %v483
    %v651 = vunpack.c.l.b16 %v484
    %v652 = vunpack.c.h.b16 %v484
    %v653 = vunpack.c.l.b16 %v485
    %v654 = vunpack.c.h.b16 %v485
    %v655 = vunpack.c.l.b16 %v486
    %v656 = vunpack.c.h.b16 %v486
    %v657 = vunpack.c.l.b16 %v487
    %v658 = vunpack.c.h.b16 %v487
    %v659 = vunpack.c.l.b16 %v488
    %v660 = vunpack.c.h.b16 %v488
    %v661 = vunpack.c.l.b16 %v489
    %v662 = vunpack.c.h.b16 %v489
    %v663 = vunpack.c.l.b16 %v490
    %v664 = vunpack.c.h.b16 %v490
    %v665 = vunpack.c.l.b16 %v491
    %v666 = vunpack.c.h.b16 %v491
    %v667 = vunpack.c.l.b16 %v492
    %v668 = vunpack.c.h.b16 %v492
    %v669 = vunpack.c.l.b16 %v493
    %v670 = vunpack.c.h.b16 %v493
    %v671 = vunpack.c.l.b16 %v494
    %v672 = vunpack.c.h.b16 %v494
    %v673 = vunpack.c.l.b16 %v495
    %v674 = vunpack.c.h.b16 %v495
    %v675 = vunpack.c.l.b16 %v496
    %v676 = vunpack.c.h.b16 %v496
    %v677 = vunpack.c.l.b16 %v497
    %v678 = vunpack.c.h.b16 %v497
    %v679 = vunpack.c.l.b16 %v498
    %v680 = vunpack.c.h.b16 %v498
    %v681 = vunpack.c.l.b16 %v499
    %v682 = vunpack.c.h.b16 %v499
    %v683 = vunpack.c.l.b16 %v500
    %v684 = vunpack.c.h.b16 %v500
    %v685 = vunpack.c.l.b16 %v501
    %v686 = vunpack.c.h.b16 %v501
    %v687 = vunpack.c.l.b16 %v502
    %v688 = vunpack.c.h.b16 %v502
    %v689 = vunpack.c.l.b16 %v503
    %v690 = vunpack.c.h.b16 %v503
    %v691 = vunpack.c.l.b16 %v504
    %v692 = vunpack.c.h.b16 %v504
    %v693 = vunpack.c.l.b16 %v505
    %v694 = vunpack.c.h.b16 %v505
    %v695 = vunpack.c.l.b16 %v506
    %v696 = vunpack.c.h.b16 %v506
    %v697 = vunpack.c.l.b16 %v507
    %v698 = vunpack.c.h.b16 %v507
    %v699 = vunpack.c.l.b16 %v508
    %v700 = vunpack.c.h.b16 %v508
    %v701 = vunpack.c.l.b16 %v509
    %v702 = vunpack.c.h.b16 %v509
    %v703 = vunpack.c.l.b16 %v510
    %v704 = vunpack.c.h.b16 %v510
    %v705 = vunpack.c.l.b16 %v511
    %v706 = vunpack.c.h.b16 %v511
    %v707 = vunpack.c.l.b16 %v512
    %v708 = vunpack.c.h.b16 %v512
    %v709 = vunpack.c.l.b16 %v513
    %v710 = vunpack.c.h.b16 %v513
    %v711 = vunpack.c.l.b16 %v514
    %v712 = vunpack.c.h.b16 %v514
    %v713 = vunpack.c.l.b16 %v515
    %v714 = vunpack.c.h.b16 %v515
    %v715 = vunpack.c.l.b16 %v516
    %v716 = vunpack.c.h.b16 %v516
    %v717 = vunpack.c.l.b16 %v517
    %v718 = vunpack.c.h.b16 %v517
    %v719 = vunpack.c.l.b16 %v518
    %v720 = vunpack.c.h.b16 %v518
    %v721 = vunpack.c.l.b16 %v519
    %v722 = vunpack.c.h.b16 %v519
    %v723 = vunpack.c.l.b16 %v520
    %v724 = vunpack.c.h.b16 %v520
    %v725 = vpack.c.b16 %v599, %v597
    %v726 = vpack.c.b16 %v600, %v598
    %v727 = vpack.c.b16 %v603, %v601
    %v728 = vpack.c.b16 %v604, %v602
    %v729 = vpack.c.b16 %v607, %v605
    %v730 = vpack.c.b16 %v608, %v606
    %v731 = vpack.c.b16 %v611, %v609
    %v732 = vpack.c.b16 %v612, %v610
    %v733 = vpack.c.b16 %v615, %v613
    %v734 = vpack.c.b16 %v616, %v614
    %v735 = vpack.c.b16 %v619, %v617
    %v736 = vpack.c.b16 %v620, %v618
    %v737 = vpack.c.b16 %v623, %v621
    %v738 = vpack.c.b16 %v624, %v622
    %v739 = vpack.c.b16 %v627, %v625
    %v740 = vpack.c.b16 %v628, %v626
    %v741 = vpack.c.b16 %v631, %v629
    %v742 = vpack.c.b16 %v632, %v630
    %v743 = vpack.c.b16 %v635, %v633
    %v744 = vpack.c.b16 %v636, %v634
    %v745 = vpack.c.b16 %v639, %v637
    %v746 = vpack.c.b16 %v640, %v638
    %v747 = vpack.c.b16 %v643, %v641
    %v748 = vpack.c.b16 %v644, %v642
    %v749 = vpack.c.b16 %v647, %v645
    %v750 = vpack.c.b16 %v648, %v646
    %v751 = vpack.c.b16 %v651, %v649
    %v752 = vpack.c.b16 %v652, %v650
    %v753 = vpack.c.b16 %v655, %v653
    %v754 = vpack.c.b16 %v656, %v654
    %v755 = vpack.c.b16 %v659, %v657
    %v756 = vpack.c.b16 %v660, %v658
    %v757 = vpack.c.b16 %v663, %v661
    %v758 = vpack.c.b16 %v664, %v662
    %v759 = vpack.c.b16 %v667, %v665
    %v760 = vpack.c.b16 %v668, %v666
    %v761 = vpack.c.b16 %v671, %v669
    %v762 = vpack.c.b16 %v672, %v670
    %v763 = vpack.c.b16 %v675, %v673
    %v764 = vpack.c.b16 %v676, %v674
    %v765 = vpack.c.b16 %v679, %v677
    %v766 = vpack.c.b16 %v680, %v678
    %v767 = vpack.c.b16 %v683, %v681
    %v768 = vpack.c.b16 %v684, %v682
    %v769 = vpack.c.b16 %v687, %v685
    %v770 = vpack.c.b16 %v688, %v686
    %v771 = vpack.c.b16 %v691, %v689
    %v772 = vpack.c.b16 %v692, %v690
    %v773 = vpack.c.b16 %v695, %v693
    %v774 = vpack.c.b16 %v696, %v694
    %v775 = vpack.c.b16 %v699, %v697
    %v776 = vpack.c.b16 %v700, %v698
    %v777 = vpack.c.b16 %v703, %v701
    %v778 = vpack.c.b16 %v704, %v702
    %v779 = vpack.c.b16 %v707, %v705
    %v780 = vpack.c.b16 %v708, %v706
    %v781 = vpack.c.b16 %v711, %v709
    %v782 = vpack.c.b16 %v712, %v710
    %v783 = vpack.c.b16 %v715, %v713
    %v784 = vpack.c.b16 %v716, %v714
    %v785 = vpack.c.b16 %v719, %v717
    %v786 = vpack.c.b16 %v720, %v718
    %v787 = vpack.c.b16 %v723, %v721
    %v788 = vpack.c.b16 %v724, %v722
    %853 = vmatprep.subr.bf16.mxu0 %v726
    %854 = vmatpush1.bf16.msra.mxu0 %v725
    %855 = vmatprep.subr.bf16.mxu0 %v728
    %856 = vmatpush1.bf16.msra.mxu0 %v727
    %857 = vmatprep.subr.bf16.mxu0 %v730
    %858 = vmatpush1.bf16.msra.mxu0 %v729
    %859 = vmatprep.subr.bf16.mxu0 %v732
    %860 = vmatpush1.bf16.msra.mxu0 %v731
    %861 = vmatprep.subr.bf16.mxu0 %v734
    %862 = vmatpush1.bf16.msra.mxu0 %v733
    %863 = vmatprep.subr.bf16.mxu0 %v736
    %864 = vmatpush1.bf16.msra.mxu0 %v735
    %865 = vmatprep.subr.bf16.mxu0 %v738
    %866 = vmatpush1.bf16.msra.mxu0 %v737
    %867 = vmatprep.subr.bf16.mxu0 %v740
    %868 = vmatpush1.bf16.msra.mxu0 %v739
    %869 = vmatprep.subr.bf16.mxu0 %v742
    %870 = vmatpush1.bf16.msra.mxu0 %v741
    %871 = vmatprep.subr.bf16.mxu0 %v744
    %872 = vmatpush1.bf16.msra.mxu0 %v743
    %873 = vmatprep.subr.bf16.mxu0 %v746
    %874 = vmatpush1.bf16.msra.mxu0 %v745
    %875 = vmatprep.subr.bf16.mxu0 %v748
    %876 = vmatpush1.bf16.msra.mxu0 %v747
    %877 = vmatprep.subr.bf16.mxu0 %v750
    %878 = vmatpush1.bf16.msra.mxu0 %v749
    %879 = vmatprep.subr.bf16.mxu0 %v752
    %880 = vmatpush1.bf16.msra.mxu0 %v751
    %881 = vmatprep.subr.bf16.mxu0 %v754
    %882 = vmatpush1.bf16.msra.mxu0 %v753
    %883 = vmatprep.subr.bf16.mxu0 %v756
    %884 = vmatpush1.bf16.msra.mxu0 %v755
    %885 = vmatprep.mubr.bf16.mxu0 %v452
    %886 = vmatmul.mubr.bf16.gmra.mrb[0].mxu0 %v451
    %v887 = vpop.f32.mrb[0].mxu0
    %v888 = vadd.f32 %v526, %v887
    %v889 = vpop.f32.mrb[0].mxu0
    %v890 = vadd.f32 %v530, %v889
    %v891 = vpop.f32.mrb[0].mxu0
    %v892 = vadd.f32 %v526, %v891
    %v893 = vpop.f32.mrb[0].mxu0
    %v894 = vadd.f32 %v530, %v893
    %895 = vdwg.mxu0
    %896 = vmatprep.subr.bf16.mxu0 %v758
    %897 = vmatpush1.bf16.msra.mxu0 %v757
    %898 = vmatprep.subr.bf16.mxu0 %v760
    %899 = vmatpush1.bf16.msra.mxu0 %v759
    %900 = vmatprep.subr.bf16.mxu0 %v762
    %901 = vmatpush1.bf16.msra.mxu0 %v761
    %902 = vmatprep.subr.bf16.mxu0 %v764
    %903 = vmatpush1.bf16.msra.mxu0 %v763
    %904 = vmatprep.subr.bf16.mxu0 %v766
    %905 = vmatpush1.bf16.msra.mxu0 %v765
    %906 = vmatprep.subr.bf16.mxu0 %v768
    %907 = vmatpush1.bf16.msra.mxu0 %v767
    %908 = vmatprep.subr.bf16.mxu0 %v770
    %909 = vmatpush1.bf16.msra.mxu0 %v769
    %910 = vmatprep.subr.bf16.mxu0 %v772
    %911 = vmatpush1.bf16.msra.mxu0 %v771
    %912 = vmatprep.subr.bf16.mxu0 %v774
    %913 = vmatpush1.bf16.msra.mxu0 %v773
    %914 = vmatprep.subr.bf16.mxu0 %v776
    %915 = vmatpush1.bf16.msra.mxu0 %v775
    %916 = vmatprep.subr.bf16.mxu0 %v778
    %917 = vmatpush1.bf16.msra.mxu0 %v777
    %918 = vmatprep.subr.bf16.mxu0 %v780
    %919 = vmatpush1.bf16.msra.mxu0 %v779
    %920 = vmatprep.subr.bf16.mxu0 %v782
    %921 = vmatpush1.bf16.msra.mxu0 %v781
    %922 = vmatprep.subr.bf16.mxu0 %v784
    %923 = vmatpush1.bf16.msra.mxu0 %v783
    %924 = vmatprep.subr.bf16.mxu0 %v786
    %925 = vmatpush1.bf16.msra.mxu0 %v785
    %926 = vmatprep.subr.bf16.mxu0 %v788
    %927 = vmatpush1.bf16.msra.mxu0 %v787
    %928 = vmatprep.mubr.bf16.mxu0 %v454
    %929 = vmatmul.mubr.bf16.gmra.mrb[0].mxu0 %v453
    %v930 = vpop.f32.mrb[0].mxu0
    %v931 = vadd.f32 %v888, %v930
    %v932 = vpop.f32.mrb[0].mxu0
    %v933 = vadd.f32 %v890, %v932
    %v934 = vpop.f32.mrb[0].mxu0
    %v935 = vadd.f32 %v892, %v934
    %v936 = vpop.f32.mrb[0].mxu0
    %v937 = vadd.f32 %v894, %v936
    %938 = vdwg.mxu0
    %v939 = vmul.f32 %v931, %v931
    %v940 = vmul.f32 %v933, %v933
    %v941 = vmul.f32 %v935, %v935
    %v942 = vmul.f32 %v937, %v937
    %v943 = vmul.f32 %v931, %v939
    %v944 = vmul.f32 %v933, %v940
    %v945 = vmul.f32 %v935, %v941
    %v946 = vmul.f32 %v937, %v942
    %v947 = vmul.f32 %v943, 0.044715
    %v948 = vmul.f32 %v944, 0.044715
    %v949 = vmul.f32 %v945, 0.044715
    %v950 = vmul.f32 %v946, 0.044715
    %v951 = vadd.f32 %v931, %v947
    %v952 = vadd.f32 %v933, %v948
    %v953 = vadd.f32 %v935, %v949
    %v954 = vadd.f32 %v937, %v950
    %v955 = vmul.f32 %v951, 0.7978846
    %v956 = vmul.f32 %v952, 0.7978846
    %v957 = vmul.f32 %v953, 0.7978846
    %v958 = vmul.f32 %v954, 0.7978846
    %v959 = vtanh.pop %v955
    %v960 = vtanh.pop %v956
    %v961 = vtanh.pop %v957
    %v962 = vtanh.pop %v958
    %v963 = vadd.f32 %v959, 1.0
    %v964 = vadd.f32 %v960, 1.0
    %v965 = vadd.f32 %v961, 1.0
    %v966 = vadd.f32 %v962, 1.0
    %v967 = vmul.f32 %v963, 0.5
    %v968 = vmul.f32 %v964, 0.5
    %v969 = vmul.f32 %v965, 0.5
    %v970 = vmul.f32 %v966, 0.5
    %v971 = vmul.f32 %v931, %v967
    %v972 = vmul.f32 %v933, %v968
    %v973 = vmul.f32 %v935, %v969
    %v974 = vmul.f32 %v937, %v970
    %v975 = vpack.c.bf16 %v973, %v971
    %v976 = vpack.c.bf16 %v974, %v972
    %v977 = vld [vmem:[#allocation8] sm:$0xf]
    %v978 = vld [vmem:[#allocation8 + $0x4] sm:$0xf]
    %v979 = vld [vmem:[#allocation8 + $0x8] sm:$0xf]
    %v980 = vld [vmem:[#allocation8 + $0xc] sm:$0xf]
    %v981 = vld [vmem:[#allocation8 + $0x10] sm:$0xf]
    %v982 = vld [vmem:[#allocation8 + $0x14] sm:$0xf]
    %v983 = vld [vmem:[#allocation8 + $0x18] sm:$0xf]
    %v984 = vld [vmem:[#allocation8 + $0x1c] sm:$0xf]
    %v985 = vld [vmem:[#allocation8 + $0x20] sm:$0xf]
    %v986 = vld [vmem:[#allocation8 + $0x24] sm:$0xf]
    %v987 = vld [vmem:[#allocation8 + $0x28] sm:$0xf]
    %v988 = vld [vmem:[#allocation8 + $0x2c] sm:$0xf]
    %v989 = vld [vmem:[#allocation8 + $0x30] sm:$0xf]
    %v990 = vld [vmem:[#allocation8 + $0x34] sm:$0xf]
    %v991 = vld [vmem:[#allocation8 + $0x38] sm:$0xf]
    %v992 = vld [vmem:[#allocation8 + $0x3c] sm:$0xf]
    %v993 = vld [vmem:[#allocation8 + $0x40] sm:$0xf]
    %v994 = vld [vmem:[#allocation8 + $0x44] sm:$0xf]
    %v995 = vld [vmem:[#allocation8 + $0x48] sm:$0xf]
    %v996 = vld [vmem:[#allocation8 + $0x4c] sm:$0xf]
    %v997 = vld [vmem:[#allocation8 + $0x50] sm:$0xf]
    %v998 = vld [vmem:[#allocation8 + $0x54] sm:$0xf]
    %v999 = vld [vmem:[#allocation8 + $0x58] sm:$0xf]
    %v1000 = vld [vmem:[#allocation8 + $0x5c] sm:$0xf]
    %v1001 = vld [vmem:[#allocation8 + $0x60] sm:$0xf]
    %v1002 = vld [vmem:[#allocation8 + $0x64] sm:$0xf]
    %v1003 = vld [vmem:[#allocation8 + $0x68] sm:$0xf]
    %v1004 = vld [vmem:[#allocation8 + $0x6c] sm:$0xf]
    %v1005 = vld [vmem:[#allocation8 + $0x70] sm:$0xf]
    %v1006 = vld [vmem:[#allocation8 + $0x74] sm:$0xf]
    %v1007 = vld [vmem:[#allocation8 + $0x78] sm:$0xf]
    %v1008 = vld [vmem:[#allocation8 + $0x7c] sm:$0xf]
    %v1009 = vld [vmem:[#allocation10] sm:$0xf]
    %v1010 = vld [vmem:[#allocation10 + $0x4] sm:$0xf]
    %v1011 = vld [vmem:[#allocation10 + $0x8] sm:$0xf]
    %v1012 = vld [vmem:[#allocation10 + $0xc] sm:$0xf]
    %v1013 = vld [vmem:[#allocation10 + $0x10] sm:$0xf]
    %v1014 = vld [vmem:[#allocation10 + $0x14] sm:$0xf]
    %v1015 = vld [vmem:[#allocation10 + $0x18] sm:$0xf]
    %v1016 = vld [vmem:[#allocation10 + $0x1c] sm:$0xf]
    %v1017 = vld [vmem:[#allocation10 + $0x20] sm:$0xf]
    %v1018 = vld [vmem:[#allocation10 + $0x24] sm:$0xf]
    %v1019 = vld [vmem:[#allocation10 + $0x28] sm:$0xf]
    %v1020 = vld [vmem:[#allocation10 + $0x2c] sm:$0xf]
    %v1021 = vld [vmem:[#allocation10 + $0x30] sm:$0xf]
    %v1022 = vld [vmem:[#allocation10 + $0x34] sm:$0xf]
    %v1023 = vld [vmem:[#allocation10 + $0x38] sm:$0xf]
    %v1024 = vld [vmem:[#allocation10 + $0x3c] sm:$0xf]
    %v1025 = vld [vmem:[#allocation10 + $0x40] sm:$0xf]
    %v1026 = vld [vmem:[#allocation10 + $0x44] sm:$0xf]
    %v1027 = vld [vmem:[#allocation10 + $0x48] sm:$0xf]
    %v1028 = vld [vmem:[#allocation10 + $0x4c] sm:$0xf]
    %v1029 = vld [vmem:[#allocation10 + $0x50] sm:$0xf]
    %v1030 = vld [vmem:[#allocation10 + $0x54] sm:$0xf]
    %v1031 = vld [vmem:[#allocation10 + $0x58] sm:$0xf]
    %v1032 = vld [vmem:[#allocation10 + $0x5c] sm:$0xf]
    %v1033 = vld [vmem:[#allocation10 + $0x60] sm:$0xf]
    %v1034 = vld [vmem:[#allocation10 + $0x64] sm:$0xf]
    %v1035 = vld [vmem:[#allocation10 + $0x68] sm:$0xf]
    %v1036 = vld [vmem:[#allocation10 + $0x6c] sm:$0xf]
    %v1037 = vld [vmem:[#allocation10 + $0x70] sm:$0xf]
    %v1038 = vld [vmem:[#allocation10 + $0x74] sm:$0xf]
    %v1039 = vld [vmem:[#allocation10 + $0x78] sm:$0xf]
    %v1040 = vld [vmem:[#allocation10 + $0x7c] sm:$0xf]
    %v1073 = vunpack.c.l.b16 %v1009
    %v1074 = vunpack.c.l.b16 %v1010
    %v1075 = vunpack.c.l.b16 %v1011
    %v1076 = vunpack.c.l.b16 %v1012
    %v1077 = vunpack.c.l.b16 %v1013
    %v1078 = vunpack.c.l.b16 %v1014
    %v1079 = vunpack.c.l.b16 %v1015
    %v1080 = vunpack.c.l.b16 %v1016
    %v1081 = vunpack.c.l.b16 %v1017
    %v1082 = vunpack.c.l.b16 %v1018
    %v1083 = vunpack.c.l.b16 %v1019
    %v1084 = vunpack.c.l.b16 %v1020
    %v1085 = vunpack.c.l.b16 %v1021
    %v1086 = vunpack.c.l.b16 %v1022
    %v1087 = vunpack.c.l.b16 %v1023
    %v1088 = vunpack.c.l.b16 %v1024
    %v1089 = vunpack.c.l.b16 %v1025
    %v1090 = vunpack.c.l.b16 %v1026
    %v1091 = vunpack.c.l.b16 %v1027
    %v1092 = vunpack.c.l.b16 %v1028
    %v1093 = vunpack.c.l.b16 %v1029
    %v1094 = vunpack.c.l.b16 %v1030
    %v1095 = vunpack.c.l.b16 %v1031
    %v1096 = vunpack.c.l.b16 %v1032
    %v1097 = vunpack.c.l.b16 %v1033
    %v1098 = vunpack.c.l.b16 %v1034
    %v1099 = vunpack.c.l.b16 %v1035
    %v1100 = vunpack.c.l.b16 %v1036
    %v1101 = vunpack.c.l.b16 %v1037
    %v1102 = vunpack.c.l.b16 %v1038
    %v1103 = vunpack.c.l.b16 %v1039
    %v1104 = vunpack.c.l.b16 %v1040
    %v1105 = vpack.c.b16 %v1074, %v1073
    %v1106 = vpack.c.b16 %v1076, %v1075
    %v1107 = vpack.c.b16 %v1078, %v1077
    %v1108 = vpack.c.b16 %v1080, %v1079
    %v1109 = vpack.c.b16 %v1082, %v1081
    %v1110 = vpack.c.b16 %v1084, %v1083
    %v1111 = vpack.c.b16 %v1086, %v1085
    %v1112 = vpack.c.b16 %v1088, %v1087
    %v1113 = vpack.c.b16 %v1090, %v1089
    %v1114 = vpack.c.b16 %v1092, %v1091
    %v1115 = vpack.c.b16 %v1094, %v1093
    %v1116 = vpack.c.b16 %v1096, %v1095
    %v1117 = vpack.c.b16 %v1098, %v1097
    %v1118 = vpack.c.b16 %v1100, %v1099
    %v1119 = vpack.c.b16 %v1102, %v1101
    %v1120 = vpack.c.b16 %v1104, %v1103
    %1137 = vmatprep.subr.bf16.mxu0 0
    %1138 = vmatpush1.bf16.msra.mxu0 %v1105
    %1139 = vmatprep.subr.bf16.mxu0 0
    %1140 = vmatpush1.bf16.msra.mxu0 %v1106
    %1141 = vmatprep.subr.bf16.mxu0 0
    %1142 = vmatpush1.bf16.msra.mxu0 %v1107
    %1143 = vmatprep.subr.bf16.mxu0 0
    %1144 = vmatpush1.bf16.msra.mxu0 %v1108
    %1145 = vmatprep.subr.bf16.mxu0 0
    %1146 = vmatpush1.bf16.msra.mxu0 %v1109
    %1147 = vmatprep.subr.bf16.mxu0 0
    %1148 = vmatpush1.bf16.msra.mxu0 %v1110
    %1149 = vmatprep.subr.bf16.mxu0 0
    %1150 = vmatpush1.bf16.msra.mxu0 %v1111
    %1151 = vmatprep.subr.bf16.mxu0 0
    %1152 = vmatpush1.bf16.msra.mxu0 %v1112
    %1153 = vmatprep.subr.bf16.mxu0 0
    %1154 = vmatpush1.bf16.msra.mxu0 %v1113
    %1155 = vmatprep.subr.bf16.mxu0 0
    %1156 = vmatpush1.bf16.msra.mxu0 %v1114
    %1157 = vmatprep.subr.bf16.mxu0 0
    %1158 = vmatpush1.bf16.msra.mxu0 %v1115
    %1159 = vmatprep.subr.bf16.mxu0 0
    %1160 = vmatpush1.bf16.msra.mxu0 %v1116
    %1161 = vmatprep.subr.bf16.mxu0 0
    %1162 = vmatpush1.bf16.msra.mxu0 %v1117
    %1163 = vmatprep.subr.bf16.mxu0 0
    %1164 = vmatpush1.bf16.msra.mxu0 %v1118
    %1165 = vmatprep.subr.bf16.mxu0 0
    %1166 = vmatpush1.bf16.msra.mxu0 %v1119
    %1167 = vmatprep.subr.bf16.mxu0 0
    %1168 = vmatpush1.bf16.msra.mxu0 %v1120
    %1169 = vmatprep.mubr.bf16.mxu0 %v456
    %1170 = vmatmul.mubr.bf16.gmra.mrb[0].mxu0 %v455
    %v1171 = vpop.f32.mrb[0].mxu0
    %v1172 = vadd.f32 0.0, %v1171
    %v1173 = vpop.f32.mrb[0].mxu0
    %v1174 = vpop.f32.mrb[0].mxu0
    %v1175 = vadd.f32 0.0, %v1174
    %v1176 = vpop.f32.mrb[0].mxu0
    %1177 = vdwg.mxu0
    %v1210 = vunpack.c.l.b16 %v977
    %v1211 = vunpack.c.l.b16 %v978
    %v1212 = vunpack.c.l.b16 %v979
    %v1213 = vunpack.c.l.b16 %v980
    %v1214 = vunpack.c.l.b16 %v981
    %v1215 = vunpack.c.l.b16 %v982
    %v1216 = vunpack.c.l.b16 %v983
    %v1217 = vunpack.c.l.b16 %v984
    %v1218 = vunpack.c.l.b16 %v985
    %v1219 = vunpack.c.l.b16 %v986
    %v1220 = vunpack.c.l.b16 %v987
    %v1221 = vunpack.c.l.b16 %v988
    %v1222 = vunpack.c.l.b16 %v989
    %v1223 = vunpack.c.l.b16 %v990
    %v1224 = vunpack.c.l.b16 %v991
    %v1225 = vunpack.c.l.b16 %v992
    %v1226 = vunpack.c.l.b16 %v993
    %v1227 = vunpack.c.l.b16 %v994
    %v1228 = vunpack.c.l.b16 %v995
    %v1229 = vunpack.c.l.b16 %v996
    %v1230 = vunpack.c.l.b16 %v997
    %v1231 = vunpack.c.l.b16 %v998
    %v1232 = vunpack.c.l.b16 %v999
    %v1233 = vunpack.c.l.b16 %v1000
    %v1234 = vunpack.c.l.b16 %v1001
    %v1235 = vunpack.c.l.b16 %v1002
    %v1236 = vunpack.c.l.b16 %v1003
    %v1237 = vunpack.c.l.b16 %v1004
    %v1238 = vunpack.c.l.b16 %v1005
    %v1239 = vunpack.c.l.b16 %v1006
    %v1240 = vunpack.c.l.b16 %v1007
    %v1241 = vunpack.c.l.b16 %v1008
    %v1242 = vpack.c.b16 %v1211, %v1210
    %v1243 = vpack.c.b16 %v1213, %v1212
    %v1244 = vpack.c.b16 %v1215, %v1214
    %v1245 = vpack.c.b16 %v1217, %v1216
    %v1246 = vpack.c.b16 %v1219, %v1218
    %v1247 = vpack.c.b16 %v1221, %v1220
    %v1248 = vpack.c.b16 %v1223, %v1222
    %v1249 = vpack.c.b16 %v1225, %v1224
    %v1250 = vpack.c.b16 %v1227, %v1226
    %v1251 = vpack.c.b16 %v1229, %v1228
    %v1252 = vpack.c.b16 %v1231, %v1230
    %v1253 = vpack.c.b16 %v1233, %v1232
    %v1254 = vpack.c.b16 %v1235, %v1234
    %v1255 = vpack.c.b16 %v1237, %v1236
    %v1256 = vpack.c.b16 %v1239, %v1238
    %v1257 = vpack.c.b16 %v1241, %v1240
    %1274 = vmatprep.subr.bf16.mxu0 0
    %1275 = vmatpush1.bf16.msra.mxu0 %v1242
    %1276 = vmatprep.subr.bf16.mxu0 0
    %1277 = vmatpush1.bf16.msra.mxu0 %v1243
    %1278 = vmatprep.subr.bf16.mxu0 0
    %1279 = vmatpush1.bf16.msra.mxu0 %v1244
    %1280 = vmatprep.subr.bf16.mxu0 0
    %1281 = vmatpush1.bf16.msra.mxu0 %v1245
    %1282 = vmatprep.subr.bf16.mxu0 0
    %1283 = vmatpush1.bf16.msra.mxu0 %v1246
    %1284 = vmatprep.subr.bf16.mxu0 0
    %1285 = vmatpush1.bf16.msra.mxu0 %v1247
    %1286 = vmatprep.subr.bf16.mxu0 0
    %1287 = vmatpush1.bf16.msra.mxu0 %v1248
    %1288 = vmatprep.subr.bf16.mxu0 0
    %1289 = vmatpush1.bf16.msra.mxu0 %v1249
    %1290 = vmatprep.subr.bf16.mxu0 0
    %1291 = vmatpush1.bf16.msra.mxu0 %v1250
    %1292 = vmatprep.subr.bf16.mxu0 0
    %1293 = vmatpush1.bf16.msra.mxu0 %v1251
    %1294 = vmatprep.subr.bf16.mxu0 0
    %1295 = vmatpush1.bf16.msra.mxu0 %v1252
    %1296 = vmatprep.subr.bf16.mxu0 0
    %1297 = vmatpush1.bf16.msra.mxu0 %v1253
    %1298 = vmatprep.subr.bf16.mxu0 0
    %1299 = vmatpush1.bf16.msra.mxu0 %v1254
    %1300 = vmatprep.subr.bf16.mxu0 0
    %1301 = vmatpush1.bf16.msra.mxu0 %v1255
    %1302 = vmatprep.subr.bf16.mxu0 0
    %1303 = vmatpush1.bf16.msra.mxu0 %v1256
    %1304 = vmatprep.subr.bf16.mxu0 0
    %1305 = vmatpush1.bf16.msra.mxu0 %v1257
    %1306 = vmatprep.mubr.bf16.mxu0 %v976
    %1307 = vmatmul.mubr.bf16.gmra.mrb[0].mxu0 %v975
    %v1308 = vpop.f32.mrb[0].mxu0
    %v1309 = vadd.f32 %v1172, %v1308
    %v1310 = vpop.f32.mrb[0].mxu0
    %v1311 = vpop.f32.mrb[0].mxu0
    %v1312 = vadd.f32 %v1175, %v1311
    %v1313 = vpop.f32.mrb[0].mxu0
    %1314 = vdwg.mxu0
    %v1315 = vld [vmem:[%s7] sm:$0x1]
    %v1317 = vlaneseq
    %v1318 = vshrl.u32 %v1317, 7
    %v1319 = vsub.s32 0, %v1318
    %v1320 = vrot.slane %v1315, %v1319
    %v1322 = vadd.f32 %v1309, %v1320
    %v1323 = vadd.f32 %v1312, %v1320
    %1324 = vst [vmem:[#allocation11] sm:$0xff] %v1322
    %1325 = vst [vmem:[#allocation11 + $0x8] sm:$0xff] %v1323
    // Predicated region
    $region54: #{tpu_custom_call.1} parent=1 // pred_check
      _
    $region55: #{tpu_custom_call.1} parent=1 // pred_check_branch
      %1327 = sbr.rel (0) target = $region57
    $region56: #{tpu_custom_call.1} parent=1 // pred_region
      %s1329 = ssub.s32 256, 256
      %1330 = vsyncadd [#allocation4], %s1329
      %s1331 = sshll.u32 [#allocation11], 4
      %s1332 = int_to_ptr.vmem [resolvable:$true] %s1331
      %1337 = dma.vmem_to_hbm [thread:$0]  %s1332, 256, %s8, [#allocation4], 128, 128, 8
    $region57: #{tpu_custom_call.1} parent=1 // pred_fallthru
      _
    // Predicated region
    $region58: #{tpu_custom_call.1} parent=1 // pred_check
      _
    $region59: #{tpu_custom_call.1} parent=1 // pred_check_branch
      %1339 = sbr.rel (0) target = $region61
    $region60: #{tpu_custom_call.1} parent=1 // pred_region
      %1340 = dma.done [#allocation4], 256
    $region61: #{tpu_custom_call.1} parent=1 // pred_fallthru
      _
    %1341 = vsyncpa [#allocation3], 1
    %1342 = vsyncpa [#allocation6], 1
    %1343 = vsyncpa [#allocation9], 1
    %1344 = vsyncpa [#allocation4], 1

// kernel: tpu_custom_call.1
$region0: #{tpu_custom_call.1}
  #allocation0 [shape = 'u32[]', space=smem, size = 0x4, offset = 0x4, fixed_abs, tag = 'smem constant byte address 0x4 - core index']
  #allocation1 [shape = 'u32[144,128]{1,0:T(1,128)}', space=vmem, size = 0x12000, scoped, tag = 'internal scratch']
  %s0 = inlined_call_operand.hbm [shape: bf16[16,32], index: 0, kind: input, shape index: {}]
  %s1 = inlined_call_operand.hbm [shape: bf16[32,768], index: 1, kind: input, shape index: {}]
  %s2 = inlined_call_operand.vmem [shape: f32[1,768], index: 2, kind: input, shape index: {}]
  %s3 = inlined_call_operand.hbm [shape: bf16[512,256], index: 3, kind: input, shape index: {}]
  %s4 = inlined_call_operand.vmem [shape: f32[1,256], index: 4, kind: input, shape index: {}]
  %s5 = inlined_call_operand.hbm [shape: bf16[256,128], index: 5, kind: input, shape index: {}]
  %s6 = inlined_call_operand.hbm [shape: bf16[256,128], index: 6, kind: input, shape index: {}]
  %s7 = inlined_call_operand.vmem [shape: f32[1,128], index: 7, kind: input, shape index: {}]
  %s8 = inlined_call_operand.hbm [shape: f32[16,128], index: 8, kind: output, shape index: {}]
  %s9 = sld [smem:[#allocation0]]
  $region62: #{tpu_custom_call.1} parent=0
    _
  %s11 = ssub.s32 1, %s9
  %s12 = scalar_select 0, %s11, %s9
  $region1: #{tpu_custom_call.1} parent=0
    #allocation2 [shape = 'u8[4096]{0}', space=vmem, size = 0x1000, scoped, tag = 'input window, operand 0, single buffered']
    #allocation3 [shape = 's32[1]{0}', space=sflag, size = 0x4, scoped, tag = 'scoped memory for tpu_custom_call.1']
    #allocation4 [shape = 's32[1]{0}', space=sflag, size = 0x4, scoped, tag = 'scoped memory for tpu_custom_call.1']
    #allocation5 [shape = 'u8[49152]{0}', space=vmem, size = 0xc000, scoped, tag = 'input window, operand 1, single buffered']
    #allocation6 [shape = 's32[1]{0}', space=sflag, size = 0x4, scoped, tag = 'scoped memory for tpu_custom_call.1']
    #allocation7 [shape = 'u8[262144]{0}', space=vmem, size = 0x40000, scoped, tag = 'input window, operand 3, single buffered']
    #allocation8 [shape = 'u8[65536]{0}', space=vmem, size = 0x10000, scoped, tag = 'input window, operand 5, single buffered']
    #allocation9 [shape = 's32[1]{0}', space=sflag, size = 0x4, scoped, tag = 'scoped memory for tpu_custom_call.1']
    #allocation10 [shape = 'u8[65536]{0}', space=vmem, size = 0x10000, scoped, tag = 'input window, operand 6, single buffered']
    #allocation11 [shape = 'u8[8192]{0}', space=vmem, size = 0x2000, scoped, tag = 'output window, operand 0, single buffered']
    %13 = vsyncpa [#allocation3], 0
    %14 = vsyncpa [#allocation6], 0
    %15 = vsyncpa [#allocation9], 0
    %16 = vsyncpa [#allocation4], 0
    // Predicated region
    $region2: #{tpu_custom_call.1} parent=1 // pred_check
      _
    $region3: #{tpu_custom_call.1} parent=1 // pred_check_branch
      %18 = sbr.rel (0) target = $region5
    $region4: #{tpu_custom_call.1} parent=1 // pred_region
      %s20 = ssub.s32 128, 128
      %21 = vsyncadd [#allocation3], %s20
      %s22 = sshll.u32 [#allocation2], 4
      %s23 = int_to_ptr.vmem [resolvable:$true] %s22
      %28 = dma.hbm_to_vmem [thread:$0]  %s0, 128, %s23, [#allocation3], 64, 64, 4
    $region5: #{tpu_custom_call.1} parent=1 // pred_fallthru
      _
    // Predicated region
    $region6: #{tpu_custom_call.1} parent=1 // pred_check
      _
    $region7: #{tpu_custom_call.1} parent=1 // pred_check_branch
      %30 = sbr.rel (0) target = $region9
    $region8: #{tpu_custom_call.1} parent=1 // pred_region
      %s32 = ssub.s32 1536, 1536
      %33 = vsyncadd [#allocation6], %s32
      %s34 = sshll.u32 [#allocation5], 4
      %s35 = int_to_ptr.vmem [resolvable:$true] %s34
      %40 = dma.hbm_to_vmem [thread:$0]  %s1, 1536, %s35, [#allocation6], 384, 384, 24
    $region9: #{tpu_custom_call.1} parent=1 // pred_fallthru
      _
    // Predicated region
    $region10: #{tpu_custom_call.1} parent=1 // pred_check
      _
    $region11: #{tpu_custom_call.1} parent=1 // pred_check_branch
      %42 = sbr.rel (0) target = $region13
    $region12: #{tpu_custom_call.1} parent=1 // pred_region
      _
    $region13: #{tpu_custom_call.1} parent=1 // pred_fallthru
      _
    // Predicated region
    $region14: #{tpu_custom_call.1} parent=1 // pred_check
      _
    $region15: #{tpu_custom_call.1} parent=1 // pred_check_branch
      %44 = sbr.rel (0) target = $region17
    $region16: #{tpu_custom_call.1} parent=1 // pred_region
      %s46 = ssub.s32 8192, 8192
      %47 = vsyncadd [#allocation6], %s46
      %s48 = sshll.u32 [#allocation7], 4
      %s49 = int_to_ptr.vmem [resolvable:$true] %s48
      %54 = dma.hbm_to_vmem [thread:$0]  %s3, 8192, %s49, [#allocation6], 128, 128, 8
    $region17: #{tpu_custom_call.1} parent=1 // pred_fallthru
      _
    // Predicated region
    $region18: #{tpu_custom_call.1} parent=1 // pred_check
      _
    $region19: #{tpu_custom_call.1} parent=1 // pred_check_branch
      %56 = sbr.rel (0) target = $region21
    $region20: #{tpu_custom_call.1} parent=1 // pred_region
      _
    $region21: #{tpu_custom_call.1} parent=1 // pred_fallthru
      _
    // Predicated region
    $region22: #{tpu_custom_call.1} parent=1 // pred_check
      _
    $region23: #{tpu_custom_call.1} parent=1 // pred_check_branch
      %58 = sbr.rel (0) target = $region25
    $region24: #{tpu_custom_call.1} parent=1 // pred_region
      %s60 = ssub.s32 2048, 2048
      %61 = vsyncadd [#allocation9], %s60
      %s62 = sshll.u32 [#allocation8], 4
      %s63 = int_to_ptr.vmem [resolvable:$true] %s62
      %68 = dma.hbm_to_vmem [thread:$0]  %s5, 2048, %s63, [#allocation9], 64, 64, 4
    $region25: #{tpu_custom_call.1} parent=1 // pred_fallthru
      _
    // Predicated region
    $region26: #{tpu_custom_call.1} parent=1 // pred_check
      _
    $region27: #{tpu_custom_call.1} parent=1 // pred_check_branch
      %70 = sbr.rel (0) target = $region29
    $region28: #{tpu_custom_call.1} parent=1 // pred_region
      %s72 = ssub.s32 2048, 2048
      %73 = vsyncadd [#allocation9], %s72
      %s74 = sshll.u32 [#allocation10], 4
      %s75 = int_to_ptr.vmem [resolvable:$true] %s74
      %80 = dma.hbm_to_vmem [thread:$0]  %s6, 2048, %s75, [#allocation9], 64, 64, 4
    $region29: #{tpu_custom_call.1} parent=1 // pred_fallthru
      _
    // Predicated region
    $region30: #{tpu_custom_call.1} parent=1 // pred_check
      _
    $region31: #{tpu_custom_call.1} parent=1 // pred_check_branch
      %82 = sbr.rel (0) target = $region33
    $region32: #{tpu_custom_call.1} parent=1 // pred_region
      _
    $region33: #{tpu_custom_call.1} parent=1 // pred_fallthru
      _
    // Predicated region
    $region34: #{tpu_custom_call.1} parent=1 // pred_check
      _
    $region35: #{tpu_custom_call.1} parent=1 // pred_check_branch
      %84 = sbr.rel (0) target = $region37
    $region36: #{tpu_custom_call.1} parent=1 // pred_region
      %85 = dma.done [#allocation3], 128
    $region37: #{tpu_custom_call.1} parent=1 // pred_fallthru
      _
    // Predicated region
    $region38: #{tpu_custom_call.1} parent=1 // pred_check
      _
    $region39: #{tpu_custom_call.1} parent=1 // pred_check_branch
      %87 = sbr.rel (0) target = $region41
    $region40: #{tpu_custom_call.1} parent=1 // pred_region
      %88 = dma.done [#allocation6], 1536
    $region41: #{tpu_custom_call.1} parent=1 // pred_fallthru
      _
    // Predicated region
    $region42: #{tpu_custom_call.1} parent=1 // pred_check
      _
    $region43: #{tpu_custom_call.1} parent=1 // pred_check_branch
      %90 = sbr.rel (0) target = $region45
    $region44: #{tpu_custom_call.1} parent=1 // pred_region
      %91 = dma.done [#allocation6], 8192
    $region45: #{tpu_custom_call.1} parent=1 // pred_fallthru
      _
    // Predicated region
    $region46: #{tpu_custom_call.1} parent=1 // pred_check
      _
    $region47: #{tpu_custom_call.1} parent=1 // pred_check_branch
      %93 = sbr.rel (0) target = $region49
    $region48: #{tpu_custom_call.1} parent=1 // pred_region
      %94 = dma.done [#allocation9], 2048
    $region49: #{tpu_custom_call.1} parent=1 // pred_fallthru
      _
    // Predicated region
    $region50: #{tpu_custom_call.1} parent=1 // pred_check
      _
    $region51: #{tpu_custom_call.1} parent=1 // pred_check_branch
      %96 = sbr.rel (0) target = $region53
    $region52: #{tpu_custom_call.1} parent=1 // pred_region
      %97 = dma.done [#allocation9], 2048
    $region53: #{tpu_custom_call.1} parent=1 // pred_fallthru
      _
    %v99 = vld [vmem:[#allocation2] sm:$0xf]
    %v100 = vld [vmem:[#allocation2 + $0x4] sm:$0xf]
    %v101 = vld [vmem:[#allocation5] sm:$0xff]
    %v102 = vld [vmem:[#allocation5 + $0x8] sm:$0xff]
    %v103 = vld [vmem:[#allocation5 + $0x10] sm:$0xff]
    %v104 = vld [vmem:[#allocation5 + $0x18] sm:$0xff]
    %v105 = vld [vmem:[#allocation5 + $0x20] sm:$0xff]
    %v106 = vld [vmem:[#allocation5 + $0x28] sm:$0xff]
    %v107 = vld [vmem:[#allocation5 + $0x30] sm:$0xff]
    %v108 = vld [vmem:[#allocation5 + $0x38] sm:$0xff]
    %v109 = vld [vmem:[#allocation5 + $0x40] sm:$0xff]
    %v110 = vld [vmem:[#allocation5 + $0x48] sm:$0xff]
    %v111 = vld [vmem:[#allocation5 + $0x50] sm:$0xff]
    %v112 = vld [vmem:[#allocation5 + $0x58] sm:$0xff]
    %v113 = vld [vmem:[%s2] sm:$0x3f]
    %v115 = vlaneseq
    %v116 = vshrl.u32 %v115, 7
    %v117 = vsub.s32 0, %v116
    %v118 = vrot.slane %v113, %v117
    %v119 = vlaneseq
    %v120 = vshrl.u32 %v119, 7
    %v121 = vsub.s32 1, %v120
    %v122 = vrot.slane %v113, %v121
    %v123 = vlaneseq
    %v124 = vshrl.u32 %v123, 7
    %v125 = vsub.s32 2, %v124
    %v126 = vrot.slane %v113, %v125
    %v127 = vlaneseq
    %v128 = vshrl.u32 %v127, 7
    %v129 = vsub.s32 3, %v128
    %v130 = vrot.slane %v113, %v129
    %v131 = vlaneseq
    %v132 = vshrl.u32 %v131, 7
    %v133 = vsub.s32 4, %v132
    %v134 = vrot.slane %v113, %v133
    %v135 = vlaneseq
    %v136 = vshrl.u32 %v135, 7
    %v137 = vsub.s32 5, %v136
    %v138 = vrot.slane %v113, %v137
    %v147 = vunpack.c.l.b16 %v99
    %v148 = vunpack.c.l.b16 %v100
    %v149 = vpack.c.b16 %v148, %v147
    %v162 = vunpack.c.l.b16 %v101
    %v163 = vunpack.c.h.b16 %v101
    %v164 = vunpack.c.l.b16 %v102
    %v165 = vunpack.c.h.b16 %v102
    %v166 = vunpack.c.l.b16 %v103
    %v167 = vunpack.c.h.b16 %v103
    %v168 = vunpack.c.l.b16 %v104
    %v169 = vunpack.c.h.b16 %v104
    %v170 = vunpack.c.l.b16 %v105
    %v171 = vunpack.c.h.b16 %v105
    %v172 = vunpack.c.l.b16 %v106
    %v173 = vunpack.c.h.b16 %v106
    %v174 = vunpack.c.l.b16 %v107
    %v175 = vunpack.c.h.b16 %v107
    %v176 = vunpack.c.l.b16 %v108
    %v177 = vunpack.c.h.b16 %v108
    %v178 = vunpack.c.l.b16 %v109
    %v179 = vunpack.c.h.b16 %v109
    %v180 = vunpack.c.l.b16 %v110
    %v181 = vunpack.c.h.b16 %v110
    %v182 = vunpack.c.l.b16 %v111
    %v183 = vunpack.c.h.b16 %v111
    %v184 = vunpack.c.l.b16 %v112
    %v185 = vunpack.c.h.b16 %v112
    %v186 = vpack.c.b16 %v168, %v162
    %v187 = vpack.c.b16 %v169, %v163
    %v188 = vpack.c.b16 %v170, %v164
    %v189 = vpack.c.b16 %v171, %v165
    %v190 = vpack.c.b16 %v172, %v166
    %v191 = vpack.c.b16 %v173, %v167
    %v192 = vpack.c.b16 %v180, %v174
    %v193 = vpack.c.b16 %v181, %v175
    %v194 = vpack.c.b16 %v182, %v176
    %v195 = vpack.c.b16 %v183, %v177
    %v196 = vpack.c.b16 %v184, %v178
    %v197 = vpack.c.b16 %v185, %v179
    %vm210 = vcmask 261120
    %v212 = vsel %vm210, %v149, 0
    %214 = vmatprep.subr.bf16.mxu0 %v187
    %215 = vmatpush1.bf16.msra.mxu0 %v186
    %216 = vmatprep.subr.bf16.mxu0 %v193
    %217 = vmatpush1.bf16.msra.mxu0 %v192
    %218 = vmatprep.subr.bf16.mxu0 0
    %219 = vmatpush1.bf16.msra.mxu0 0
    %220 = vmatprep.subr.bf16.mxu0 0
    %221 = vmatpush1.bf16.msra.mxu0 0
    %222 = vmatprep.subr.bf16.mxu0 0
    %223 = vmatpush1.bf16.msra.mxu0 0
    %224 = vmatprep.subr.bf16.mxu0 0
    %225 = vmatpush1.bf16.msra.mxu0 0
    %226 = vmatprep.subr.bf16.mxu0 0
    %227 = vmatpush1.bf16.msra.mxu0 0
    %228 = vmatprep.subr.bf16.mxu0 0
    %229 = vmatpush1.bf16.msra.mxu0 0
    %230 = vmatprep.subr.bf16.mxu0 0
    %231 = vmatpush1.bf16.msra.mxu0 0
    %232 = vmatprep.subr.bf16.mxu0 0
    %233 = vmatpush1.bf16.msra.mxu0 0
    %234 = vmatprep.subr.bf16.mxu0 0
    %235 = vmatpush1.bf16.msra.mxu0 0
    %236 = vmatprep.subr.bf16.mxu0 0
    %237 = vmatpush1.bf16.msra.mxu0 0
    %238 = vmatprep.subr.bf16.mxu0 0
    %239 = vmatpush1.bf16.msra.mxu0 0
    %240 = vmatprep.subr.bf16.mxu0 0
    %241 = vmatpush1.bf16.msra.mxu0 0
    %242 = vmatprep.subr.bf16.mxu0 0
    %243 = vmatpush1.bf16.msra.mxu0 0
    %244 = vmatprep.subr.bf16.mxu0 0
    %245 = vmatpush1.bf16.msra.mxu0 0
    %246 = vmatprep.mubr.bf16.mxu0 0
    %247 = vmatmul.mubr.bf16.gmra.mrb[0].mxu0 %v212
    %v248 = vpop.f32.mrb[0].mxu0
    %v249 = vadd.f32 %v118, %v248
    %v250 = vpop.f32.mrb[0].mxu0
    %v251 = vadd.f32 %v122, %v250
    %v252 = vpop.f32.mrb[0].mxu0
    %v253 = vadd.f32 %v118, %v252
    %v254 = vpop.f32.mrb[0].mxu0
    %v255 = vadd.f32 %v122, %v254
    %256 = vdwg.mxu0
    %257 = vmatprep.subr.bf16.mxu0 %v189
    %258 = vmatpush1.bf16.msra.mxu0 %v188
    %259 = vmatprep.subr.bf16.mxu0 %v195
    %260 = vmatpush1.bf16.msra.mxu0 %v194
    %261 = vmatprep.subr.bf16.mxu0 0
    %262 = vmatpush1.bf16.msra.mxu0 0
    %263 = vmatprep.subr.bf16.mxu0 0
    %264 = vmatpush1.bf16.msra.mxu0 0
    %265 = vmatprep.subr.bf16.mxu0 0
    %266 = vmatpush1.bf16.msra.mxu0 0
    %267 = vmatprep.subr.bf16.mxu0 0
    %268 = vmatpush1.bf16.msra.mxu0 0
    %269 = vmatprep.subr.bf16.mxu0 0
    %270 = vmatpush1.bf16.msra.mxu0 0
    %271 = vmatprep.subr.bf16.mxu0 0
    %272 = vmatpush1.bf16.msra.mxu0 0
    %273 = vmatprep.subr.bf16.mxu0 0
    %274 = vmatpush1.bf16.msra.mxu0 0
    %275 = vmatprep.subr.bf16.mxu0 0
    %276 = vmatpush1.bf16.msra.mxu0 0
    %277 = vmatprep.subr.bf16.mxu0 0
    %278 = vmatpush1.bf16.msra.mxu0 0
    %279 = vmatprep.subr.bf16.mxu0 0
    %280 = vmatpush1.bf16.msra.mxu0 0
    %281 = vmatprep.subr.bf16.mxu0 0
    %282 = vmatpush1.bf16.msra.mxu0 0
    %283 = vmatprep.subr.bf16.mxu0 0
    %284 = vmatpush1.bf16.msra.mxu0 0
    %285 = vmatprep.subr.bf16.mxu0 0
    %286 = vmatpush1.bf16.msra.mxu0 0
    %287 = vmatprep.subr.bf16.mxu0 0
    %288 = vmatpush1.bf16.msra.mxu0 0
    %289 = vmatprep.mubr.bf16.mxu0 0
    %290 = vmatmul.mubr.bf16.gmra.mrb[0].mxu0 %v212
    %v291 = vpop.f32.mrb[0].mxu0
    %v292 = vadd.f32 %v126, %v291
    %v293 = vpop.f32.mrb[0].mxu0
    %v294 = vadd.f32 %v130, %v293
    %v295 = vpop.f32.mrb[0].mxu0
    %v296 = vadd.f32 %v126, %v295
    %v297 = vpop.f32.mrb[0].mxu0
    %v298 = vadd.f32 %v130, %v297
    %299 = vdwg.mxu0
    %300 = vmatprep.subr.bf16.mxu0 %v191
    %301 = vmatpush1.bf16.msra.mxu0 %v190
    %302 = vmatprep.subr.bf16.mxu0 %v197
    %303 = vmatpush1.bf16.msra.mxu0 %v196
    %304 = vmatprep.subr.bf16.mxu0 0
    %305 = vmatpush1.bf16.msra.mxu0 0
    %306 = vmatprep.subr.bf16.mxu0 0
    %307 = vmatpush1.bf16.msra.mxu0 0
    %308 = vmatprep.subr.bf16.mxu0 0
    %309 = vmatpush1.bf16.msra.mxu0 0
    %310 = vmatprep.subr.bf16.mxu0 0
    %311 = vmatpush1.bf16.msra.mxu0 0
    %312 = vmatprep.subr.bf16.mxu0 0
    %313 = vmatpush1.bf16.msra.mxu0 0
    %314 = vmatprep.subr.bf16.mxu0 0
    %315 = vmatpush1.bf16.msra.mxu0 0
    %316 = vmatprep.subr.bf16.mxu0 0
    %317 = vmatpush1.bf16.msra.mxu0 0
    %318 = vmatprep.subr.bf16.mxu0 0
    %319 = vmatpush1.bf16.msra.mxu0 0
    %320 = vmatprep.subr.bf16.mxu0 0
    %321 = vmatpush1.bf16.msra.mxu0 0
    %322 = vmatprep.subr.bf16.mxu0 0
    %323 = vmatpush1.bf16.msra.mxu0 0
    %324 = vmatprep.subr.bf16.mxu0 0
    %325 = vmatpush1.bf16.msra.mxu0 0
    %326 = vmatprep.subr.bf16.mxu0 0
    %327 = vmatpush1.bf16.msra.mxu0 0
    %328 = vmatprep.subr.bf16.mxu0 0
    %329 = vmatpush1.bf16.msra.mxu0 0
    %330 = vmatprep.subr.bf16.mxu0 0
    %331 = vmatpush1.bf16.msra.mxu0 0
    %332 = vmatprep.mubr.bf16.mxu0 0
    %333 = vmatmul.mubr.bf16.gmra.mrb[0].mxu0 %v212
    %v334 = vpop.f32.mrb[0].mxu0
    %v335 = vadd.f32 %v134, %v334
    %v336 = vpop.f32.mrb[0].mxu0
    %v337 = vadd.f32 %v138, %v336
    %v338 = vpop.f32.mrb[0].mxu0
    %v339 = vadd.f32 %v134, %v338
    %v340 = vpop.f32.mrb[0].mxu0
    %v341 = vadd.f32 %v138, %v340
    %342 = vdwg.mxu0
    %v343 = vmul.f32 %v249, %v249
    %v344 = vmul.f32 %v251, %v251
    %v345 = vmul.f32 %v292, %v292
    %v346 = vmul.f32 %v294, %v294
    %v347 = vmul.f32 %v335, %v335
    %v348 = vmul.f32 %v337, %v337
    %v349 = vmul.f32 %v253, %v253
    %v350 = vmul.f32 %v255, %v255
    %v351 = vmul.f32 %v296, %v296
    %v352 = vmul.f32 %v298, %v298
    %v353 = vmul.f32 %v339, %v339
    %v354 = vmul.f32 %v341, %v341
    %v355 = vmul.f32 %v249, %v343
    %v356 = vmul.f32 %v251, %v344
    %v357 = vmul.f32 %v292, %v345
    %v358 = vmul.f32 %v294, %v346
    %v359 = vmul.f32 %v335, %v347
    %v360 = vmul.f32 %v337, %v348
    %v361 = vmul.f32 %v253, %v349
    %v362 = vmul.f32 %v255, %v350
    %v363 = vmul.f32 %v296, %v351
    %v364 = vmul.f32 %v298, %v352
    %v365 = vmul.f32 %v339, %v353
    %v366 = vmul.f32 %v341, %v354
    %v367 = vmul.f32 %v355, 0.044715
    %v368 = vmul.f32 %v356, 0.044715
    %v369 = vmul.f32 %v357, 0.044715
    %v370 = vmul.f32 %v358, 0.044715
    %v371 = vmul.f32 %v359, 0.044715
    %v372 = vmul.f32 %v360, 0.044715
    %v373 = vmul.f32 %v361, 0.044715
    %v374 = vmul.f32 %v362, 0.044715
    %v375 = vmul.f32 %v363, 0.044715
    %v376 = vmul.f32 %v364, 0.044715
    %v377 = vmul.f32 %v365, 0.044715
    %v378 = vmul.f32 %v366, 0.044715
    %v379 = vadd.f32 %v249, %v367
    %v380 = vadd.f32 %v251, %v368
    %v381 = vadd.f32 %v292, %v369
    %v382 = vadd.f32 %v294, %v370
    %v383 = vadd.f32 %v335, %v371
    %v384 = vadd.f32 %v337, %v372
    %v385 = vadd.f32 %v253, %v373
    %v386 = vadd.f32 %v255, %v374
    %v387 = vadd.f32 %v296, %v375
    %v388 = vadd.f32 %v298, %v376
    %v389 = vadd.f32 %v339, %v377
    %v390 = vadd.f32 %v341, %v378
    %v391 = vmul.f32 %v379, 0.7978846
    %v392 = vmul.f32 %v380, 0.7978846
    %v393 = vmul.f32 %v381, 0.7978846
    %v394 = vmul.f32 %v382, 0.7978846
    %v395 = vmul.f32 %v383, 0.7978846
    %v396 = vmul.f32 %v384, 0.7978846
    %v397 = vmul.f32 %v385, 0.7978846
    %v398 = vmul.f32 %v386, 0.7978846
    %v399 = vmul.f32 %v387, 0.7978846
    %v400 = vmul.f32 %v388, 0.7978846
    %v401 = vmul.f32 %v389, 0.7978846
    %v402 = vmul.f32 %v390, 0.7978846
    %v403 = vtanh.pop %v391
    %v404 = vtanh.pop %v392
    %v405 = vtanh.pop %v393
    %v406 = vtanh.pop %v394
    %v407 = vtanh.pop %v395
    %v408 = vtanh.pop %v396
    %v409 = vtanh.pop %v397
    %v410 = vtanh.pop %v398
    %v411 = vtanh.pop %v399
    %v412 = vtanh.pop %v400
    %v413 = vtanh.pop %v401
    %v414 = vtanh.pop %v402
    %v415 = vadd.f32 %v403, 1.0
    %v416 = vadd.f32 %v404, 1.0
    %v417 = vadd.f32 %v405, 1.0
    %v418 = vadd.f32 %v406, 1.0
    %v419 = vadd.f32 %v407, 1.0
    %v420 = vadd.f32 %v408, 1.0
    %v421 = vadd.f32 %v409, 1.0
    %v422 = vadd.f32 %v410, 1.0
    %v423 = vadd.f32 %v411, 1.0
    %v424 = vadd.f32 %v412, 1.0
    %v425 = vadd.f32 %v413, 1.0
    %v426 = vadd.f32 %v414, 1.0
    %v427 = vmul.f32 %v415, 0.5
    %v428 = vmul.f32 %v416, 0.5
    %v429 = vmul.f32 %v417, 0.5
    %v430 = vmul.f32 %v418, 0.5
    %v431 = vmul.f32 %v419, 0.5
    %v432 = vmul.f32 %v420, 0.5
    %v433 = vmul.f32 %v421, 0.5
    %v434 = vmul.f32 %v422, 0.5
    %v435 = vmul.f32 %v423, 0.5
    %v436 = vmul.f32 %v424, 0.5
    %v437 = vmul.f32 %v425, 0.5
    %v438 = vmul.f32 %v426, 0.5
    %v439 = vmul.f32 %v249, %v427
    %v440 = vmul.f32 %v251, %v428
    %v441 = vmul.f32 %v292, %v429
    %v442 = vmul.f32 %v294, %v430
    %v443 = vmul.f32 %v335, %v431
    %v444 = vmul.f32 %v337, %v432
    %v445 = vmul.f32 %v253, %v433
    %v446 = vmul.f32 %v255, %v434
    %v447 = vmul.f32 %v296, %v435
    %v448 = vmul.f32 %v298, %v436
    %v449 = vmul.f32 %v339, %v437
    %v450 = vmul.f32 %v341, %v438
    %v451 = vpack.c.bf16 %v445, %v439
    %v452 = vpack.c.bf16 %v446, %v440
    %v453 = vpack.c.bf16 %v447, %v441
    %v454 = vpack.c.bf16 %v448, %v442
    %v455 = vpack.c.bf16 %v449, %v443
    %v456 = vpack.c.bf16 %v450, %v444
    %v457 = vld [vmem:[#allocation7] sm:$0xff]
    %v458 = vld [vmem:[#allocation7 + $0x8] sm:$0xff]
    %v459 = vld [vmem:[#allocation7 + $0x10] sm:$0xff]
    %v460 = vld [vmem:[#allocation7 + $0x18] sm:$0xff]
    %v461 = vld [vmem:[#allocation7 + $0x20] sm:$0xff]
    %v462 = vld [vmem:[#allocation7 + $0x28] sm:$0xff]
    %v463 = vld [vmem:[#allocation7 + $0x30] sm:$0xff]
    %v464 = vld [vmem:[#allocation7 + $0x38] sm:$0xff]
    %v465 = vld [vmem:[#allocation7 + $0x40] sm:$0xff]
    %v466 = vld [vmem:[#allocation7 + $0x48] sm:$0xff]
    %v467 = vld [vmem:[#allocation7 + $0x50] sm:$0xff]
    %v468 = vld [vmem:[#allocation7 + $0x58] sm:$0xff]
    %v469 = vld [vmem:[#allocation7 + $0x60] sm:$0xff]
    %v470 = vld [vmem:[#allocation7 + $0x68] sm:$0xff]
    %v471 = vld [vmem:[#allocation7 + $0x70] sm:$0xff]
    %v472 = vld [vmem:[#allocation7 + $0x78] sm:$0xff]
    %v473 = vld [vmem:[#allocation7 + $0x80] sm:$0xff]
    %v474 = vld [vmem:[#allocation7 + $0x88] sm:$0xff]
    %v475 = vld [vmem:[#allocation7 + $0x90] sm:$0xff]
    %v476 = vld [vmem:[#allocation7 + $0x98] sm:$0xff]
    %v477 = vld [vmem:[#allocation7 + $0xa0] sm:$0xff]
    %v478 = vld [vmem:[#allocation7 + $0xa8] sm:$0xff]
    %v479 = vld [vmem:[#allocation7 + $0xb0] sm:$0xff]
    %v480 = vld [vmem:[#allocation7 + $0xb8] sm:$0xff]
    %v481 = vld [vmem:[#allocation7 + $0xc0] sm:$0xff]
    %v482 = vld [vmem:[#allocation7 + $0xc8] sm:$0xff]
    %v483 = vld [vmem:[#allocation7 + $0xd0] sm:$0xff]
    %v484 = vld [vmem:[#allocation7 + $0xd8] sm:$0xff]
    %v485 = vld [vmem:[#allocation7 + $0xe0] sm:$0xff]
    %v486 = vld [vmem:[#allocation7 + $0xe8] sm:$0xff]
    %v487 = vld [vmem:[#allocation7 + $0xf0] sm:$0xff]
    %v488 = vld [vmem:[#allocation7 + $0xf8] sm:$0xff]
    %v489 = vld [vmem:[#allocation7 + $0x100] sm:$0xff]
    %v490 = vld [vmem:[#allocation7 + $0x108] sm:$0xff]
    %v491 = vld [vmem:[#allocation7 + $0x110] sm:$0xff]
    %v492 = vld [vmem:[#allocation7 + $0x118] sm:$0xff]
    %v493 = vld [vmem:[#allocation7 + $0x120] sm:$0xff]
    %v494 = vld [vmem:[#allocation7 + $0x128] sm:$0xff]
    %v495 = vld [vmem:[#allocation7 + $0x130] sm:$0xff]
    %v496 = vld [vmem:[#allocation7 + $0x138] sm:$0xff]
    %v497 = vld [vmem:[#allocation7 + $0x140] sm:$0xff]
    %v498 = vld [vmem:[#allocation7 + $0x148] sm:$0xff]
    %v499 = vld [vmem:[#allocation7 + $0x150] sm:$0xff]
    %v500 = vld [vmem:[#allocation7 + $0x158] sm:$0xff]
    %v501 = vld [vmem:[#allocation7 + $0x160] sm:$0xff]
    %v502 = vld [vmem:[#allocation7 + $0x168] sm:$0xff]
    %v503 = vld [vmem:[#allocation7 + $0x170] sm:$0xff]
    %v504 = vld [vmem:[#allocation7 + $0x178] sm:$0xff]
    %v505 = vld [vmem:[#allocation7 + $0x180] sm:$0xff]
    %v506 = vld [vmem:[#allocation7 + $0x188] sm:$0xff]
    %v507 = vld [vmem:[#allocation7 + $0x190] sm:$0xff]
    %v508 = vld [vmem:[#allocation7 + $0x198] sm:$0xff]
    %v509 = vld [vmem:[#allocation7 + $0x1a0] sm:$0xff]
    %v510 = vld [vmem:[#allocation7 + $0x1a8] sm:$0xff]
    %v511 = vld [vmem:[#allocation7 + $0x1b0] sm:$0xff]
    %v512 = vld [vmem:[#allocation7 + $0x1b8] sm:$0xff]
    %v513 = vld [vmem:[#allocation7 + $0x1c0] sm:$0xff]
    %v514 = vld [vmem:[#allocation7 + $0x1c8] sm:$0xff]
    %v515 = vld [vmem:[#allocation7 + $0x1d0] sm:$0xff]
    %v516 = vld [vmem:[#allocation7 + $0x1d8] sm:$0xff]
    %v517 = vld [vmem:[#allocation7 + $0x1e0] sm:$0xff]
    %v518 = vld [vmem:[#allocation7 + $0x1e8] sm:$0xff]
    %v519 = vld [vmem:[#allocation7 + $0x1f0] sm:$0xff]
    %v520 = vld [vmem:[#allocation7 + $0x1f8] sm:$0xff]
    %v521 = vld [vmem:[%s4] sm:$0x3]
    %v523 = vlaneseq
    %v524 = vshrl.u32 %v523, 7
    %v525 = vsub.s32 0, %v524
    %v526 = vrot.slane %v521, %v525
    %v527 = vlaneseq
    %v528 = vshrl.u32 %v527, 7
    %v529 = vsub.s32 1, %v528
    %v530 = vrot.slane %v521, %v529
    %v597 = vunpack.c.l.b16 %v457
    %v598 = vunpack.c.h.b16 %v457
    %v599 = vunpack.c.l.b16 %v458
    %v600 = vunpack.c.h.b16 %v458
    %v601 = vunpack.c.l.b16 %v459
    %v602 = vunpack.c.h.b16 %v459
    %v603 = vunpack.c.l.b16 %v460
    %v604 = vunpack.c.h.b16 %v460
    %v605 = vunpack.c.l.b16 %v461
    %v606 = vunpack.c.h.b16 %v461
    %v607 = vunpack.c.l.b16 %v462
    %v608 = vunpack.c.h.b16 %v462
    %v609 = vunpack.c.l.b16 %v463
    %v610 = vunpack.c.h.b16 %v463
    %v611 = vunpack.c.l.b16 %v464
    %v612 = vunpack.c.h.b16 %v464
    %v613 = vunpack.c.l.b16 %v465
    %v614 = vunpack.c.h.b16 %v465
    %v615 = vunpack.c.l.b16 %v466
    %v616 = vunpack.c.h.b16 %v466
    %v617 = vunpack.c.l.b16 %v467
    %v618 = vunpack.c.h.b16 %v467
    %v619 = vunpack.c.l.b16 %v468
    %v620 = vunpack.c.h.b16 %v468
    %v621 = vunpack.c.l.b16 %v469
    %v622 = vunpack.c.h.b16 %v469
    %v623 = vunpack.c.l.b16 %v470
    %v624 = vunpack.c.h.b16 %v470
    %v625 = vunpack.c.l.b16 %v471
    %v626 = vunpack.c.h.b16 %v471
    %v627 = vunpack.c.l.b16 %v472
    %v628 = vunpack.c.h.b16 %v472
    %v629 = vunpack.c.l.b16 %v473
    %v630 = vunpack.c.h.b16 %v473
    %v631 = vunpack.c.l.b16 %v474
    %v632 = vunpack.c.h.b16 %v474
    %v633 = vunpack.c.l.b16 %v475
    %v634 = vunpack.c.h.b16 %v475
    %v635 = vunpack.c.l.b16 %v476
    %v636 = vunpack.c.h.b16 %v476
    %v637 = vunpack.c.l.b16 %v477
    %v638 = vunpack.c.h.b16 %v477
    %v639 = vunpack.c.l.b16 %v478
    %v640 = vunpack.c.h.b16 %v478
    %v641 = vunpack.c.l.b16 %v479
    %v642 = vunpack.c.h.b16 %v479
    %v643 = vunpack.c.l.b16 %v480
    %v644 = vunpack.c.h.b16 %v480
    %v645 = vunpack.c.l.b16 %v481
    %v646 = vunpack.c.h.b16 %v481
    %v647 = vunpack.c.l.b16 %v482
    %v648 = vunpack.c.h.b16 %v482
    %v649 = vunpack.c.l.b16 %v483
    %v650 = vunpack.c.h.b16 %v483
    %v651 = vunpack.c.l.b16 %v484
    %v652 = vunpack.c.h.b16 %v484
    %v653 = vunpack.c.l.b16 %v485
    %v654 = vunpack.c.h.b16 %v485
    %v655 = vunpack.c.l.b16 %v486
    %v656 = vunpack.c.h.b16 %v486
    %v657 = vunpack.c.l.b16 %v487
    %v658 = vunpack.c.h.b16 %v487
    %v659 = vunpack.c.l.b16 %v488
    %v660 = vunpack.c.h.b16 %v488
    %v661 = vunpack.c.l.b16 %v489
    %v662 = vunpack.c.h.b16 %v489
    %v663 = vunpack.c.l.b16 %v490
    %v664 = vunpack.c.h.b16 %v490
    %v665 = vunpack.c.l.b16 %v491
    %v666 = vunpack.c.h.b16 %v491
    %v667 = vunpack.c.l.b16 %v492
    %v668 = vunpack.c.h.b16 %v492
    %v669 = vunpack.c.l.b16 %v493
    %v670 = vunpack.c.h.b16 %v493
    %v671 = vunpack.c.l.b16 %v494
    %v672 = vunpack.c.h.b16 %v494
    %v673 = vunpack.c.l.b16 %v495
    %v674 = vunpack.c.h.b16 %v495
    %v675 = vunpack.c.l.b16 %v496
    %v676 = vunpack.c.h.b16 %v496
    %v677 = vunpack.c.l.b16 %v497
    %v678 = vunpack.c.h.b16 %v497
    %v679 = vunpack.c.l.b16 %v498
    %v680 = vunpack.c.h.b16 %v498
    %v681 = vunpack.c.l.b16 %v499
    %v682 = vunpack.c.h.b16 %v499
    %v683 = vunpack.c.l.b16 %v500
    %v684 = vunpack.c.h.b16 %v500
    %v685 = vunpack.c.l.b16 %v501
    %v686 = vunpack.c.h.b16 %v501
    %v687 = vunpack.c.l.b16 %v502
    %v688 = vunpack.c.h.b16 %v502
    %v689 = vunpack.c.l.b16 %v503
    %v690 = vunpack.c.h.b16 %v503
    %v691 = vunpack.c.l.b16 %v504
    %v692 = vunpack.c.h.b16 %v504
    %v693 = vunpack.c.l.b16 %v505
    %v694 = vunpack.c.h.b16 %v505
    %v695 = vunpack.c.l.b16 %v506
    %v696 = vunpack.c.h.b16 %v506
    %v697 = vunpack.c.l.b16 %v507
    %v698 = vunpack.c.h.b16 %v507
    %v699 = vunpack.c.l.b16 %v508
    %v700 = vunpack.c.h.b16 %v508
    %v701 = vunpack.c.l.b16 %v509
    %v702 = vunpack.c.h.b16 %v509
    %v703 = vunpack.c.l.b16 %v510
    %v704 = vunpack.c.h.b16 %v510
    %v705 = vunpack.c.l.b16 %v511
    %v706 = vunpack.c.h.b16 %v511
    %v707 = vunpack.c.l.b16 %v512
    %v708 = vunpack.c.h.b16 %v512
    %v709 = vunpack.c.l.b16 %v513
    %v710 = vunpack.c.h.b16 %v513
    %v711 = vunpack.c.l.b16 %v514
    %v712 = vunpack.c.h.b16 %v514
    %v713 = vunpack.c.l.b16 %v515
    %v714 = vunpack.c.h.b16 %v515
    %v715 = vunpack.c.l.b16 %v516
    %v716 = vunpack.c.h.b16 %v516
    %v717 = vunpack.c.l.b16 %v517
    %v718 = vunpack.c.h.b16 %v517
    %v719 = vunpack.c.l.b16 %v518
    %v720 = vunpack.c.h.b16 %v518
    %v721 = vunpack.c.l.b16 %v519
    %v722 = vunpack.c.h.b16 %v519
    %v723 = vunpack.c.l.b16 %v520
    %v724 = vunpack.c.h.b16 %v520
    %v725 = vpack.c.b16 %v599, %v597
    %v726 = vpack.c.b16 %v600, %v598
    %v727 = vpack.c.b16 %v603, %v601
    %v728 = vpack.c.b16 %v604, %v602
    %v729 = vpack.c.b16 %v607, %v605
    %v730 = vpack.c.b16 %v608, %v606
    %v731 = vpack.c.b16 %v611, %v609
    %v732 = vpack.c.b16 %v612, %v610
    %v733 = vpack.c.b16 %v615, %v613
    %v734 = vpack.c.b16 %v616, %v614
    %v735 = vpack.c.b16 %v619, %v617
    %v736 = vpack.c.b16 %v620, %v618
    %v737 = vpack.c.b16 %v623, %v621
    %v738 = vpack.c.b16 %v624, %v622
    %v739 = vpack.c.b16 %v627, %v625
    %v740 = vpack.c.b16 %v628, %v626
    %v741 = vpack.c.b16 %v631, %v629
    %v742 = vpack.c.b16 %v632, %v630
    %v743 = vpack.c.b16 %v635, %v633
    %v744 = vpack.c.b16 %v636, %v634
    %v745 = vpack.c.b16 %v639, %v637
    %v746 = vpack.c.b16 %v640, %v638
    %v747 = vpack.c.b16 %v643, %v641
    %v748 = vpack.c.b16 %v644, %v642
    %v749 = vpack.c.b16 %v647, %v645
    %v750 = vpack.c.b16 %v648, %v646
    %v751 = vpack.c.b16 %v651, %v649
    %v752 = vpack.c.b16 %v652, %v650
    %v753 = vpack.c.b16 %v655, %v653
    %v754 = vpack.c.b16 %v656, %v654
    %v755 = vpack.c.b16 %v659, %v657
    %v756 = vpack.c.b16 %v660, %v658
    %v757 = vpack.c.b16 %v663, %v661
    %v758 = vpack.c.b16 %v664, %v662
    %v759 = vpack.c.b16 %v667, %v665
    %v760 = vpack.c.b16 %v668, %v666
    %v761 = vpack.c.b16 %v671, %v669
    %v762 = vpack.c.b16 %v672, %v670
    %v763 = vpack.c.b16 %v675, %v673
    %v764 = vpack.c.b16 %v676, %v674
    %v765 = vpack.c.b16 %v679, %v677
    %v766 = vpack.c.b16 %v680, %v678
    %v767 = vpack.c.b16 %v683, %v681
    %v768 = vpack.c.b16 %v684, %v682
    %v769 = vpack.c.b16 %v687, %v685
    %v770 = vpack.c.b16 %v688, %v686
    %v771 = vpack.c.b16 %v691, %v689
    %v772 = vpack.c.b16 %v692, %v690
    %v773 = vpack.c.b16 %v695, %v693
    %v774 = vpack.c.b16 %v696, %v694
    %v775 = vpack.c.b16 %v699, %v697
    %v776 = vpack.c.b16 %v700, %v698
    %v777 = vpack.c.b16 %v703, %v701
    %v778 = vpack.c.b16 %v704, %v702
    %v779 = vpack.c.b16 %v707, %v705
    %v780 = vpack.c.b16 %v708, %v706
    %v781 = vpack.c.b16 %v711, %v709
    %v782 = vpack.c.b16 %v712, %v710
    %v783 = vpack.c.b16 %v715, %v713
    %v784 = vpack.c.b16 %v716, %v714
    %v785 = vpack.c.b16 %v719, %v717
    %v786 = vpack.c.b16 %v720, %v718
    %v787 = vpack.c.b16 %v723, %v721
    %v788 = vpack.c.b16 %v724, %v722
    %853 = vmatprep.subr.bf16.mxu0 %v726
    %854 = vmatpush1.bf16.msra.mxu0 %v725
    %855 = vmatprep.subr.bf16.mxu0 %v728
    %856 = vmatpush1.bf16.msra.mxu0 %v727
    %857 = vmatprep.subr.bf16.mxu0 %v730
    %858 = vmatpush1.bf16.msra.mxu0 %v729
    %859 = vmatprep.subr.bf16.mxu0 %v732
    %860 = vmatpush1.bf16.msra.mxu0 %v731
    %861 = vmatprep.subr.bf16.mxu0 %v734
    %862 = vmatpush1.bf16.msra.mxu0 %v733
    %863 = vmatprep.subr.bf16.mxu0 %v736
    %864 = vmatpush1.bf16.msra.mxu0 %v735
    %865 = vmatprep.subr.bf16.mxu0 %v738
    %866 = vmatpush1.bf16.msra.mxu0 %v737
    %867 = vmatprep.subr.bf16.mxu0 %v740
    %868 = vmatpush1.bf16.msra.mxu0 %v739
    %869 = vmatprep.subr.bf16.mxu0 %v742
    %870 = vmatpush1.bf16.msra.mxu0 %v741
    %871 = vmatprep.subr.bf16.mxu0 %v744
    %872 = vmatpush1.bf16.msra.mxu0 %v743
    %873 = vmatprep.subr.bf16.mxu0 %v746
    %874 = vmatpush1.bf16.msra.mxu0 %v745
    %875 = vmatprep.subr.bf16.mxu0 %v748
    %876 = vmatpush1.bf16.msra.mxu0 %v747
    %877 = vmatprep.subr.bf16.mxu0 %v750
    %878 = vmatpush1.bf16.msra.mxu0 %v749
    %879 = vmatprep.subr.bf16.mxu0 %v752
    %880 = vmatpush1.bf16.msra.mxu0 %v751
    %881 = vmatprep.subr.bf16.mxu0 %v754
    %882 = vmatpush1.bf16.msra.mxu0 %v753
    %883 = vmatprep.subr.bf16.mxu0 %v756
    %884 = vmatpush1.bf16.msra.mxu0 %v755
    %885 = vmatprep.mubr.bf16.mxu0 %v452
    %886 = vmatmul.mubr.bf16.gmra.mrb[0].mxu0 %v451
    %v887 = vpop.f32.mrb[0].mxu0
    %v888 = vadd.f32 %v526, %v887
    %v889 = vpop.f32.mrb[0].mxu0
    %v890 = vadd.f32 %v530, %v889
    %v891 = vpop.f32.mrb[0].mxu0
    %v892 = vadd.f32 %v526, %v891
    %v893 = vpop.f32.mrb[0].mxu0
    %v894 = vadd.f32 %v530, %v893
    %895 = vdwg.mxu0
    %896 = vmatprep.subr.bf16.mxu0 %v758
    %897 = vmatpush1.bf16.msra.mxu0 %v757
    %898 = vmatprep.subr.bf16.mxu0 %v760
    %899 = vmatpush1.bf16.msra.mxu0 %v759
    %900 = vmatprep.subr.bf16.mxu0 %v762
    %901 = vmatpush1.bf16.msra.mxu0 %v761
    %902 = vmatprep.subr.bf16.mxu0 %v764
    %903 = vmatpush1.bf16.msra.mxu0 %v763
    %904 = vmatprep.subr.bf16.mxu0 %v766
    %905 = vmatpush1.bf16.msra.mxu0 %v765
    %906 = vmatprep.subr.bf16.mxu0 %v768
    %907 = vmatpush1.bf16.msra.mxu0 %v767
    %908 = vmatprep.subr.bf16.mxu0 %v770
    %909 = vmatpush1.bf16.msra.mxu0 %v769
    %910 = vmatprep.subr.bf16.mxu0 %v772
    %911 = vmatpush1.bf16.msra.mxu0 %v771
    %912 = vmatprep.subr.bf16.mxu0 %v774
    %913 = vmatpush1.bf16.msra.mxu0 %v773
    %914 = vmatprep.subr.bf16.mxu0 %v776
    %915 = vmatpush1.bf16.msra.mxu0 %v775
    %916 = vmatprep.subr.bf16.mxu0 %v778
    %917 = vmatpush1.bf16.msra.mxu0 %v777
    %918 = vmatprep.subr.bf16.mxu0 %v780
    %919 = vmatpush1.bf16.msra.mxu0 %v779
    %920 = vmatprep.subr.bf16.mxu0 %v782
    %921 = vmatpush1.bf16.msra.mxu0 %v781
    %922 = vmatprep.subr.bf16.mxu0 %v784
    %923 = vmatpush1.bf16.msra.mxu0 %v783
    %924 = vmatprep.subr.bf16.mxu0 %v786
    %925 = vmatpush1.bf16.msra.mxu0 %v785
    %926 = vmatprep.subr.bf16.mxu0 %v788
    %927 = vmatpush1.bf16.msra.mxu0 %v787
    %928 = vmatprep.mubr.bf16.mxu0 %v454
    %929 = vmatmul.mubr.bf16.gmra.mrb[0].mxu0 %v453
    %v930 = vpop.f32.mrb[0].mxu0
    %v931 = vadd.f32 %v888, %v930
    %v932 = vpop.f32.mrb[0].mxu0
    %v933 = vadd.f32 %v890, %v932
    %v934 = vpop.f32.mrb[0].mxu0
    %v935 = vadd.f32 %v892, %v934
    %v936 = vpop.f32.mrb[0].mxu0
    %v937 = vadd.f32 %v894, %v936
    %938 = vdwg.mxu0
    %v939 = vmul.f32 %v931, %v931
    %v940 = vmul.f32 %v933, %v933
    %v941 = vmul.f32 %v935, %v935
    %v942 = vmul.f32 %v937, %v937
    %v943 = vmul.f32 %v931, %v939
    %v944 = vmul.f32 %v933, %v940
    %v945 = vmul.f32 %v935, %v941
    %v946 = vmul.f32 %v937, %v942
    %v947 = vmul.f32 %v943, 0.044715
    %v948 = vmul.f32 %v944, 0.044715
    %v949 = vmul.f32 %v945, 0.044715
    %v950 = vmul.f32 %v946, 0.044715
    %v951 = vadd.f32 %v931, %v947
    %v952 = vadd.f32 %v933, %v948
    %v953 = vadd.f32 %v935, %v949
    %v954 = vadd.f32 %v937, %v950
    %v955 = vmul.f32 %v951, 0.7978846
    %v956 = vmul.f32 %v952, 0.7978846
    %v957 = vmul.f32 %v953, 0.7978846
    %v958 = vmul.f32 %v954, 0.7978846
    %v959 = vtanh.pop %v955
    %v960 = vtanh.pop %v956
    %v961 = vtanh.pop %v957
    %v962 = vtanh.pop %v958
    %v963 = vadd.f32 %v959, 1.0
    %v964 = vadd.f32 %v960, 1.0
    %v965 = vadd.f32 %v961, 1.0
    %v966 = vadd.f32 %v962, 1.0
    %v967 = vmul.f32 %v963, 0.5
    %v968 = vmul.f32 %v964, 0.5
    %v969 = vmul.f32 %v965, 0.5
    %v970 = vmul.f32 %v966, 0.5
    %v971 = vmul.f32 %v931, %v967
    %v972 = vmul.f32 %v933, %v968
    %v973 = vmul.f32 %v935, %v969
    %v974 = vmul.f32 %v937, %v970
    %v975 = vpack.c.bf16 %v973, %v971
    %v976 = vpack.c.bf16 %v974, %v972
    %v977 = vld [vmem:[#allocation8] sm:$0xf]
    %v978 = vld [vmem:[#allocation8 + $0x4] sm:$0xf]
    %v979 = vld [vmem:[#allocation8 + $0x8] sm:$0xf]
    %v980 = vld [vmem:[#allocation8 + $0xc] sm:$0xf]
    %v981 = vld [vmem:[#allocation8 + $0x10] sm:$0xf]
    %v982 = vld [vmem:[#allocation8 + $0x14] sm:$0xf]
    %v983 = vld [vmem:[#allocation8 + $0x18] sm:$0xf]
    %v984 = vld [vmem:[#allocation8 + $0x1c] sm:$0xf]
    %v985 = vld [vmem:[#allocation8 + $0x20] sm:$0xf]
    %v986 = vld [vmem:[#allocation8 + $0x24] sm:$0xf]
    %v987 = vld [vmem:[#allocation8 + $0x28] sm:$0xf]
    %v988 = vld [vmem:[#allocation8 + $0x2c] sm:$0xf]
    %v989 = vld [vmem:[#allocation8 + $0x30] sm:$0xf]
    %v990 = vld [vmem:[#allocation8 + $0x34] sm:$0xf]
    %v991 = vld [vmem:[#allocation8 + $0x38] sm:$0xf]
    %v992 = vld [vmem:[#allocation8 + $0x3c] sm:$0xf]
    %v993 = vld [vmem:[#allocation8 + $0x40] sm:$0xf]
    %v994 = vld [vmem:[#allocation8 + $0x44] sm:$0xf]
    %v995 = vld [vmem:[#allocation8 + $0x48] sm:$0xf]
    %v996 = vld [vmem:[#allocation8 + $0x4c] sm:$0xf]
    %v997 = vld [vmem:[#allocation8 + $0x50] sm:$0xf]
    %v998 = vld [vmem:[#allocation8 + $0x54] sm:$0xf]
    %v999 = vld [vmem:[#allocation8 + $0x58] sm:$0xf]
    %v1000 = vld [vmem:[#allocation8 + $0x5c] sm:$0xf]
    %v1001 = vld [vmem:[#allocation8 + $0x60] sm:$0xf]
    %v1002 = vld [vmem:[#allocation8 + $0x64] sm:$0xf]
    %v1003 = vld [vmem:[#allocation8 + $0x68] sm:$0xf]
    %v1004 = vld [vmem:[#allocation8 + $0x6c] sm:$0xf]
    %v1005 = vld [vmem:[#allocation8 + $0x70] sm:$0xf]
    %v1006 = vld [vmem:[#allocation8 + $0x74] sm:$0xf]
    %v1007 = vld [vmem:[#allocation8 + $0x78] sm:$0xf]
    %v1008 = vld [vmem:[#allocation8 + $0x7c] sm:$0xf]
    %v1009 = vld [vmem:[#allocation10] sm:$0xf]
    %v1010 = vld [vmem:[#allocation10 + $0x4] sm:$0xf]
    %v1011 = vld [vmem:[#allocation10 + $0x8] sm:$0xf]
    %v1012 = vld [vmem:[#allocation10 + $0xc] sm:$0xf]
    %v1013 = vld [vmem:[#allocation10 + $0x10] sm:$0xf]
    %v1014 = vld [vmem:[#allocation10 + $0x14] sm:$0xf]
    %v1015 = vld [vmem:[#allocation10 + $0x18] sm:$0xf]
    %v1016 = vld [vmem:[#allocation10 + $0x1c] sm:$0xf]
    %v1017 = vld [vmem:[#allocation10 + $0x20] sm:$0xf]
    %v1018 = vld [vmem:[#allocation10 + $0x24] sm:$0xf]
    %v1019 = vld [vmem:[#allocation10 + $0x28] sm:$0xf]
    %v1020 = vld [vmem:[#allocation10 + $0x2c] sm:$0xf]
    %v1021 = vld [vmem:[#allocation10 + $0x30] sm:$0xf]
    %v1022 = vld [vmem:[#allocation10 + $0x34] sm:$0xf]
    %v1023 = vld [vmem:[#allocation10 + $0x38] sm:$0xf]
    %v1024 = vld [vmem:[#allocation10 + $0x3c] sm:$0xf]
    %v1025 = vld [vmem:[#allocation10 + $0x40] sm:$0xf]
    %v1026 = vld [vmem:[#allocation10 + $0x44] sm:$0xf]
    %v1027 = vld [vmem:[#allocation10 + $0x48] sm:$0xf]
    %v1028 = vld [vmem:[#allocation10 + $0x4c] sm:$0xf]
    %v1029 = vld [vmem:[#allocation10 + $0x50] sm:$0xf]
    %v1030 = vld [vmem:[#allocation10 + $0x54] sm:$0xf]
    %v1031 = vld [vmem:[#allocation10 + $0x58] sm:$0xf]
    %v1032 = vld [vmem:[#allocation10 + $0x5c] sm:$0xf]
    %v1033 = vld [vmem:[#allocation10 + $0x60] sm:$0xf]
    %v1034 = vld [vmem:[#allocation10 + $0x64] sm:$0xf]
    %v1035 = vld [vmem:[#allocation10 + $0x68] sm:$0xf]
    %v1036 = vld [vmem:[#allocation10 + $0x6c] sm:$0xf]
    %v1037 = vld [vmem:[#allocation10 + $0x70] sm:$0xf]
    %v1038 = vld [vmem:[#allocation10 + $0x74] sm:$0xf]
    %v1039 = vld [vmem:[#allocation10 + $0x78] sm:$0xf]
    %v1040 = vld [vmem:[#allocation10 + $0x7c] sm:$0xf]
    %v1073 = vunpack.c.l.b16 %v1009
    %v1074 = vunpack.c.l.b16 %v1010
    %v1075 = vunpack.c.l.b16 %v1011
    %v1076 = vunpack.c.l.b16 %v1012
    %v1077 = vunpack.c.l.b16 %v1013
    %v1078 = vunpack.c.l.b16 %v1014
    %v1079 = vunpack.c.l.b16 %v1015
    %v1080 = vunpack.c.l.b16 %v1016
    %v1081 = vunpack.c.l.b16 %v1017
    %v1082 = vunpack.c.l.b16 %v1018
    %v1083 = vunpack.c.l.b16 %v1019
    %v1084 = vunpack.c.l.b16 %v1020
    %v1085 = vunpack.c.l.b16 %v1021
    %v1086 = vunpack.c.l.b16 %v1022
    %v1087 = vunpack.c.l.b16 %v1023
    %v1088 = vunpack.c.l.b16 %v1024
    %v1089 = vunpack.c.l.b16 %v1025
    %v1090 = vunpack.c.l.b16 %v1026
    %v1091 = vunpack.c.l.b16 %v1027
    %v1092 = vunpack.c.l.b16 %v1028
    %v1093 = vunpack.c.l.b16 %v1029
    %v1094 = vunpack.c.l.b16 %v1030
    %v1095 = vunpack.c.l.b16 %v1031
    %v1096 = vunpack.c.l.b16 %v1032
    %v1097 = vunpack.c.l.b16 %v1033
    %v1098 = vunpack.c.l.b16 %v1034
    %v1099 = vunpack.c.l.b16 %v1035
    %v1100 = vunpack.c.l.b16 %v1036
    %v1101 = vunpack.c.l.b16 %v1037
    %v1102 = vunpack.c.l.b16 %v1038
    %v1103 = vunpack.c.l.b16 %v1039
    %v1104 = vunpack.c.l.b16 %v1040
    %v1105 = vpack.c.b16 %v1074, %v1073
    %v1106 = vpack.c.b16 %v1076, %v1075
    %v1107 = vpack.c.b16 %v1078, %v1077
    %v1108 = vpack.c.b16 %v1080, %v1079
    %v1109 = vpack.c.b16 %v1082, %v1081
    %v1110 = vpack.c.b16 %v1084, %v1083
    %v1111 = vpack.c.b16 %v1086, %v1085
    %v1112 = vpack.c.b16 %v1088, %v1087
    %v1113 = vpack.c.b16 %v1090, %v1089
    %v1114 = vpack.c.b16 %v1092, %v1091
    %v1115 = vpack.c.b16 %v1094, %v1093
    %v1116 = vpack.c.b16 %v1096, %v1095
    %v1117 = vpack.c.b16 %v1098, %v1097
    %v1118 = vpack.c.b16 %v1100, %v1099
    %v1119 = vpack.c.b16 %v1102, %v1101
    %v1120 = vpack.c.b16 %v1104, %v1103
    %1137 = vmatprep.subr.bf16.mxu0 0
    %1138 = vmatpush1.bf16.msra.mxu0 %v1105
    %1139 = vmatprep.subr.bf16.mxu0 0
    %1140 = vmatpush1.bf16.msra.mxu0 %v1106
    %1141 = vmatprep.subr.bf16.mxu0 0
    %1142 = vmatpush1.bf16.msra.mxu0 %v1107
    %1143 = vmatprep.subr.bf16.mxu0 0
    %1144 = vmatpush1.bf16.msra.mxu0 %v1108
    %1145 = vmatprep.subr.bf16.mxu0 0
    %1146 = vmatpush1.bf16.msra.mxu0 %v1109
    %1147 = vmatprep.subr.bf16.mxu0 0
    %1148 = vmatpush1.bf16.msra.mxu0 %v1110
    %1149 = vmatprep.subr.bf16.mxu0 0
    %1150 = vmatpush1.bf16.msra.mxu0 %v1111
    %1151 = vmatprep.subr.bf16.mxu0 0
    %1152 = vmatpush1.bf16.msra.mxu0 %v1112
    %1153 = vmatprep.subr.bf16.mxu0 0
    %1154 = vmatpush1.bf16.msra.mxu0 %v1113
    %1155 = vmatprep.subr.bf16.mxu0 0
    %1156 = vmatpush1.bf16.msra.mxu0 %v1114
    %1157 = vmatprep.subr.bf16.mxu0 0
    %1158 = vmatpush1.bf16.msra.mxu0 %v1115
    %1159 = vmatprep.subr.bf16.mxu0 0
    %1160 = vmatpush1.bf16.msra.mxu0 %v1116
    %1161 = vmatprep.subr.bf16.mxu0 0
    %1162 = vmatpush1.bf16.msra.mxu0 %v1117
    %1163 = vmatprep.subr.bf16.mxu0 0
    %1164 = vmatpush1.bf16.msra.mxu0 %v1118
    %1165 = vmatprep.subr.bf16.mxu0 0
    %1166 = vmatpush1.bf16.msra.mxu0 %v1119
    %1167 = vmatprep.subr.bf16.mxu0 0
    %1168 = vmatpush1.bf16.msra.mxu0 %v1120
    %1169 = vmatprep.mubr.bf16.mxu0 %v456
    %1170 = vmatmul.mubr.bf16.gmra.mrb[0].mxu0 %v455
    %v1171 = vpop.f32.mrb[0].mxu0
    %v1172 = vadd.f32 0.0, %v1171
    %v1173 = vpop.f32.mrb[0].mxu0
    %v1174 = vpop.f32.mrb[0].mxu0
    %v1175 = vadd.f32 0.0, %v1174
    %v1176 = vpop.f32.mrb[0].mxu0
    %1177 = vdwg.mxu0
    %v1210 = vunpack.c.l.b16 %v977
    %v1211 = vunpack.c.l.b16 %v978
    %v1212 = vunpack.c.l.b16 %v979
    %v1213 = vunpack.c.l.b16 %v980
    %v1214 = vunpack.c.l.b16 %v981
    %v1215 = vunpack.c.l.b16 %v982
    %v1216 = vunpack.c.l.b16 %v983
    %v1217 = vunpack.c.l.b16 %v984
    %v1218 = vunpack.c.l.b16 %v985
    %v1219 = vunpack.c.l.b16 %v986
    %v1220 = vunpack.c.l.b16 %v987
    %v1221 = vunpack.c.l.b16 %v988
    %v1222 = vunpack.c.l.b16 %v989
    %v1223 = vunpack.c.l.b16 %v990
    %v1224 = vunpack.c.l.b16 %v991
    %v1225 = vunpack.c.l.b16 %v992
    %v1226 = vunpack.c.l.b16 %v993
    %v1227 = vunpack.c.l.b16 %v994
    %v1228 = vunpack.c.l.b16 %v995
    %v1229 = vunpack.c.l.b16 %v996
    %v1230 = vunpack.c.l.b16 %v997
    %v1231 = vunpack.c.l.b16 %v998
    %v1232 = vunpack.c.l.b16 %v999
    %v1233 = vunpack.c.l.b16 %v1000
    %v1234 = vunpack.c.l.b16 %v1001
    %v1235 = vunpack.c.l.b16 %v1002
    %v1236 = vunpack.c.l.b16 %v1003
    %v1237 = vunpack.c.l.b16 %v1004
    %v1238 = vunpack.c.l.b16 %v1005
    %v1239 = vunpack.c.l.b16 %v1006
    %v1240 = vunpack.c.l.b16 %v1007
    %v1241 = vunpack.c.l.b16 %v1008
    %v1242 = vpack.c.b16 %v1211, %v1210
    %v1243 = vpack.c.b16 %v1213, %v1212
    %v1244 = vpack.c.b16 %v1215, %v1214
    %v1245 = vpack.c.b16 %v1217, %v1216
    %v1246 = vpack.c.b16 %v1219, %v1218
    %v1247 = vpack.c.b16 %v1221, %v1220
    %v1248 = vpack.c.b16 %v1223, %v1222
    %v1249 = vpack.c.b16 %v1225, %v1224
    %v1250 = vpack.c.b16 %v1227, %v1226
    %v1251 = vpack.c.b16 %v1229, %v1228
    %v1252 = vpack.c.b16 %v1231, %v1230
    %v1253 = vpack.c.b16 %v1233, %v1232
    %v1254 = vpack.c.b16 %v1235, %v1234
    %v1255 = vpack.c.b16 %v1237, %v1236
    %v1256 = vpack.c.b16 %v1239, %v1238
    %v1257 = vpack.c.b16 %v1241, %v1240
    %1274 = vmatprep.subr.bf16.mxu0 0
    %1275 = vmatpush1.bf16.msra.mxu0 %v1242
    %1276 = vmatprep.subr.bf16.mxu0 0
    %1277 = vmatpush1.bf16.msra.mxu0 %v1243
    %1278 = vmatprep.subr.bf16.mxu0 0
    %1279 = vmatpush1.bf16.msra.mxu0 %v1244
    %1280 = vmatprep.subr.bf16.mxu0 0
    %1281 = vmatpush1.bf16.msra.mxu0 %v1245
    %1282 = vmatprep.subr.bf16.mxu0 0
    %1283 = vmatpush1.bf16.msra.mxu0 %v1246
    %1284 = vmatprep.subr.bf16.mxu0 0
    %1285 = vmatpush1.bf16.msra.mxu0 %v1247
    %1286 = vmatprep.subr.bf16.mxu0 0
    %1287 = vmatpush1.bf16.msra.mxu0 %v1248
    %1288 = vmatprep.subr.bf16.mxu0 0
    %1289 = vmatpush1.bf16.msra.mxu0 %v1249
    %1290 = vmatprep.subr.bf16.mxu0 0
    %1291 = vmatpush1.bf16.msra.mxu0 %v1250
    %1292 = vmatprep.subr.bf16.mxu0 0
    %1293 = vmatpush1.bf16.msra.mxu0 %v1251
    %1294 = vmatprep.subr.bf16.mxu0 0
    %1295 = vmatpush1.bf16.msra.mxu0 %v1252
    %1296 = vmatprep.subr.bf16.mxu0 0
    %1297 = vmatpush1.bf16.msra.mxu0 %v1253
    %1298 = vmatprep.subr.bf16.mxu0 0
    %1299 = vmatpush1.bf16.msra.mxu0 %v1254
    %1300 = vmatprep.subr.bf16.mxu0 0
    %1301 = vmatpush1.bf16.msra.mxu0 %v1255
    %1302 = vmatprep.subr.bf16.mxu0 0
    %1303 = vmatpush1.bf16.msra.mxu0 %v1256
    %1304 = vmatprep.subr.bf16.mxu0 0
    %1305 = vmatpush1.bf16.msra.mxu0 %v1257
    %1306 = vmatprep.mubr.bf16.mxu0 %v976
    %1307 = vmatmul.mubr.bf16.gmra.mrb[0].mxu0 %v975
    %v1308 = vpop.f32.mrb[0].mxu0
    %v1309 = vadd.f32 %v1172, %v1308
    %v1310 = vpop.f32.mrb[0].mxu0
    %v1311 = vpop.f32.mrb[0].mxu0
    %v1312 = vadd.f32 %v1175, %v1311
    %v1313 = vpop.f32.mrb[0].mxu0
    %1314 = vdwg.mxu0
    %v1315 = vld [vmem:[%s7] sm:$0x1]
    %v1317 = vlaneseq
    %v1318 = vshrl.u32 %v1317, 7
    %v1319 = vsub.s32 0, %v1318
    %v1320 = vrot.slane %v1315, %v1319
    %v1322 = vadd.f32 %v1309, %v1320
    %v1323 = vadd.f32 %v1312, %v1320
    %1324 = vst [vmem:[#allocation11] sm:$0xff] %v1322
    %1325 = vst [vmem:[#allocation11 + $0x8] sm:$0xff] %v1323
    // Predicated region
    $region54: #{tpu_custom_call.1} parent=1 // pred_check
      _
    $region55: #{tpu_custom_call.1} parent=1 // pred_check_branch
      %1327 = sbr.rel (0) target = $region57
    $region56: #{tpu_custom_call.1} parent=1 // pred_region
      %s1329 = ssub.s32 256, 256
      %1330 = vsyncadd [#allocation4], %s1329
      %s1331 = sshll.u32 [#allocation11], 4
      %s1332 = int_to_ptr.vmem [resolvable:$true] %s1331
      %1337 = dma.vmem_to_hbm [thread:$0]  %s1332, 256, %s8, [#allocation4], 128, 128, 8
    $region57: #{tpu_custom_call.1} parent=1 // pred_fallthru
      _
    // Predicated region
    $region58: #{tpu_custom_call.1} parent=1 // pred_check
      _
    $region59: #{tpu_custom_call.1} parent=1 // pred_check_branch
      %1339 = sbr.rel (0) target = $region61
    $region60: #{tpu_custom_call.1} parent=1 // pred_region
      %1340 = dma.done [#allocation4], 256
    $region61: #{tpu_custom_call.1} parent=1 // pred_fallthru
      _
    %1341 = vsyncpa [#allocation3], 1
    %1342 = vsyncpa [#allocation6], 1
    %1343 = vsyncpa [#allocation9], 1
    %1344 = vsyncpa [#allocation4], 1

</llo_original>
